<compile_context>
chip_gen: v7x
topology: tpu7x:2x2x1
jax: 0.10.0
libtpu: 0.0.40
codegen_flags: <defaults>
</compile_context>

<pallas_src>
import functools

import jax
import jax.numpy as jnp
import numpy as np
from jax.experimental import pallas as pl
from jax.experimental.pallas import tpu as pltpu


def _round_up(v, m):
    return ((v + m - 1) // m) * m


def _convlstm_kernel(x_ref, h_ref, c_ref, w_ref, mask_ref,
                     wci_ref, wcf_ref, wco_ref,
                     ch_ref, cc_ref,
                     xhp_ref, patch_ref,
                     *, K, H, W, Cin, Ch):
    """One grid step == one batch element.  Spatial data is (channels, H*W).

    x_ref   : (1, Cin, H*W) f32   input
    h_ref   : (1, Ch,  H*W) f32   previous hidden state
    c_ref   : (1, Ch,  H*W) f32   previous cell state
    w_ref   : (4*Ch, KKCpad) bf16 packed conv weights (+ bias row, zero pad)
    mask_ref: (K, H*W)      bf16  per-kx horizontal validity mask (0/1)
    wci/wcf/wco_ref: (Ch, H*W) f32 peephole weights
    ch_ref, cc_ref : (1, Ch, H*W) outputs (new hidden, new cell)
    xhp_ref  : VMEM (Cin+Ch, H*W + 2*fpad) bf16 flat zero-padded [h|x] staging
    patch_ref: VMEM (KKCpad, H*W)          bf16 transposed im2col matrix
    """
    HW = H * W
    C = Cin + Ch
    p = (K - 1) // 2
    fpad = p * W + p
    KKC = K * K * C
    KKC_pad = patch_ref.shape[0]

    # Stage the stacked [h | x] activations into a flat zero-padded bf16
    # scratch so every conv tap becomes a plain lane-shifted slice; the zeros
    # ARE the "SAME" conv padding (done in VMEM, not via jnp.pad in HBM).
    # The bf16 cast happens here on the small (C, HW) tiles.
    xhp_ref[...] = jnp.zeros_like(xhp_ref)
    xhp_ref[0:Ch, fpad:fpad + HW] = h_ref[0].astype(xhp_ref.dtype)
    xhp_ref[Ch:C, fpad:fpad + HW] = x_ref[0].astype(xhp_ref.dtype)

    # Contraction padding rows: first one is the all-ones bias row, rest zero.
    rows = jax.lax.broadcasted_iota(jnp.int32, (KKC_pad - KKC, HW), 0)
    patch_ref[KKC:, :] = jnp.where(rows == 0, 1.0, 0.0).astype(patch_ref.dtype)

    mask = mask_ref[...]                                      # (K, HW) bf16

    # Transposed im2col: one shifted + masked copy of the stacked input per
    # tap.  kx is the outer loop so each horizontal mask row is reused across
    # the K vertical taps.
    for kx in range(K):
        m_kx = mask[kx:kx + 1, :]                             # (1, HW)
        for ky in range(K):
            tap = ky * K + kx
            d = (ky - p) * W + (kx - p)                       # flat spatial shift
            win = xhp_ref[:, fpad + d:fpad + d + HW]          # (C, HW) bf16
            patch_ref[tap * C:(tap + 1) * C, :] = win * m_kx

    # All 8 convolutions + biases as ONE MXU matmul (bf16 operands, f32 acc).
    z = jnp.dot(w_ref[...], patch_ref[...],
                preferred_element_type=jnp.float32)           # (4*Ch, HW)

    zi = z[0 * Ch:1 * Ch, :]
    zf = z[1 * Ch:2 * Ch, :]
    zc = z[2 * Ch:3 * Ch, :]
    zo = z[3 * Ch:4 * Ch, :]

    c = c_ref[0]
    ci = jax.nn.sigmoid(zi + c * wci_ref[...])
    cf = jax.nn.sigmoid(zf + c * wcf_ref[...])
    cc = cf * c + ci * jnp.maximum(zc, 0.0)                   # torch.relu
    co = jax.nn.sigmoid(zo + cc * wco_ref[...])
    ch = co * jnp.maximum(cc, 0.0)                            # torch.relu

    ch_ref[...] = ch[None].astype(ch_ref.dtype)
    cc_ref[...] = cc[None].astype(cc_ref.dtype)


@jax.jit
def conv_lstm_cell(x, h, c,
                   wxi, whi, wxf, whf, wxc, whc, wxo, who,
                   bxi, bxf, bxc, bxo,
                   wci, wcf, wco):
    """ConvLSTMCell forward.  PyTorch-native layouts:
       x: (B, Cin, H, W); h, c: (B, Ch, H, W);
       conv weights OIHW: wx*: (Ch, Cin, K, K), wh*: (Ch, Ch, K, K);
       biases b*: (Ch,); peepholes wci/wcf/wco: (1, Ch, H, W).
       Returns (ch, cc), each (B, Ch, H, W)."""
    B, Cin, H, W = x.shape
    Ch = h.shape[1]
    K = wxi.shape[-1]
    p = (K - 1) // 2
    HW = H * W
    C = Cin + Ch
    KKC = K * K * C
    KKC_pad = _round_up(KKC + 1, 128)     # +1 bias row, pad to MXU-friendly 128
    fpad = p * W + p

    # ---- pack the 8 conv weights + 4 biases into one bf16 (4*Ch, KKCpad) matrix
    def per_gate(wx, wh):
        whx = jnp.concatenate([wh, wx], axis=1)          # (Ch, C, K, K): [h | x]
        return jnp.transpose(whx, (2, 3, 1, 0))          # (K, K, C, Ch)

    w_all = jnp.concatenate([per_gate(wxi, whi), per_gate(wxf, whf),
                             per_gate(wxc, whc), per_gate(wxo, who)],
                            axis=3)                      # (K, K, C, 4*Ch)
    w_rows = w_all.reshape(KKC, 4 * Ch)                  # row = (ky*K+kx)*C + ch
    bias = jnp.concatenate([bxi, bxf, bxc, bxo]).reshape(1, 4 * Ch)
    zpad = jnp.zeros((KKC_pad - KKC - 1, 4 * Ch), w_rows.dtype)
    w_packed = jnp.concatenate([w_rows, bias, zpad], axis=0).T.astype(jnp.bfloat16)

    # ---- static horizontal-validity masks (one per kx); vertical out-of-range
    # taps are handled by the zero fill of the flat VMEM scratch.  bf16 (0/1 is
    # exact) so the im2col build stays bf16 end-to-end.
    m = np.zeros((K, HW), np.float32)
    xs = np.arange(W)
    for kx in range(K):
        valid = (xs + (kx - p) >= 0) & (xs + (kx - p) < W)
        m[kx] = np.tile(valid.astype(np.float32), H)
    mask = jnp.asarray(m, dtype=jnp.bfloat16)

    # ---- flatten spatial dims (free, row-major): lanes = H*W
    x2 = x.reshape(B, Cin, HW)
    h2 = h.reshape(B, Ch, HW)
    c2 = c.reshape(B, Ch, HW)
    wci2 = wci.reshape(Ch, HW)
    wcf2 = wcf.reshape(Ch, HW)
    wco2 = wco.reshape(Ch, HW)

    kernel = functools.partial(_convlstm_kernel, K=K, H=H, W=W, Cin=Cin, Ch=Ch)

    out_shape = (
        jax.ShapeDtypeStruct((B, Ch, HW), x.dtype),
        jax.ShapeDtypeStruct((B, Ch, HW), x.dtype),
    )
    grid_spec = pltpu.PrefetchScalarGridSpec(
        num_scalar_prefetch=0,
        grid=(B,),
        in_specs=[
            pl.BlockSpec((1, Cin, HW), lambda b: (b, 0, 0)),
            pl.BlockSpec((1, Ch, HW), lambda b: (b, 0, 0)),
            pl.BlockSpec((1, Ch, HW), lambda b: (b, 0, 0)),
            pl.BlockSpec((4 * Ch, KKC_pad), lambda b: (0, 0)),
            pl.BlockSpec((K, HW), lambda b: (0, 0)),
            pl.BlockSpec((Ch, HW), lambda b: (0, 0)),
            pl.BlockSpec((Ch, HW), lambda b: (0, 0)),
            pl.BlockSpec((Ch, HW), lambda b: (0, 0)),
        ],
        out_specs=[
            pl.BlockSpec((1, Ch, HW), lambda b: (b, 0, 0)),
            pl.BlockSpec((1, Ch, HW), lambda b: (b, 0, 0)),
        ],
        scratch_shapes=[
            pltpu.VMEM((C, HW + 2 * fpad), jnp.bfloat16),
            pltpu.VMEM((KKC_pad, HW), jnp.bfloat16),
        ],
    )
    ch2, cc2 = pl.pallas_call(
        kernel,
        out_shape=out_shape,
        grid_spec=grid_spec,
        compiler_params=pltpu.CompilerParams(
            dimension_semantics=("parallel",),   # batch steps are independent
            vmem_limit_bytes=64 * 1024 * 1024,
        ),
    )(x2, h2, c2, w_packed, mask, wci2, wcf2, wco2)
    # TODO(synk): for production sizes (e.g. 64x64 with Ch>=128 on v7x) add
    # row-strip spatial tiling with a (K-1)-row halo; at these shapes the whole
    # image comfortably fits in VMEM.
    return ch2.reshape(B, Ch, H, W), cc2.reshape(B, Ch, H, W)


def _reference(x, h, c, wxi, whi, wxf, whf, wxc, whc, wxo, who,
               bxi, bxf, bxc, bxo, wci, wcf, wco):
    """Pure-JAX reference matching the PyTorch forward (NCHW / OIHW)."""
    def conv(inp, w, bias=None):
        out = jax.lax.conv_general_dilated(
            inp, w, window_strides=(1, 1), padding="SAME",
            dimension_numbers=("NCHW", "OIHW", "NCHW"),
            precision=jax.lax.Precision.HIGHEST)
        if bias is not None:
            out = out + bias[None, :, None, None]
        return out

    ci = jax.nn.sigmoid(conv(x, wxi, bxi) + conv(h, whi) + c * wci)
    cf = jax.nn.sigmoid(conv(x, wxf, bxf) + conv(h, whf) + c * wcf)
    cc = cf * c + ci * jax.nn.relu(conv(x, wxc, bxc) + conv(h, whc))
    co = jax.nn.sigmoid(conv(x, wxo, bxo) + conv(h, who) + cc * wco)
    ch = co * jax.nn.relu(cc)
    return ch, cc


if __name__ == "__main__":
    B, Cin, Ch, H, W, K = 2, 4, 32, 16, 16, 3

    key = jax.random.PRNGKey(0)
    ks = jax.random.split(key, 18)

    def bf16_round(a):
        # These tensors feed the MXU as bf16 inside the kernel; round them so the
        # f32 reference sees identical operand values and the check stays tight.
        return a.astype(jnp.bfloat16).astype(jnp.float32)

    x = bf16_round(jax.random.normal(ks[0], (B, Cin, H, W), jnp.float32))
    h = bf16_round(jax.random.normal(ks[1], (B, Ch, H, W), jnp.float32))
    c = jax.random.normal(ks[2], (B, Ch, H, W), jnp.float32)

    def mkw(i, shape):
        return bf16_round(0.1 * jax.random.normal(ks[i], shape, jnp.float32))

    wxi = mkw(3, (Ch, Cin, K, K)); whi = mkw(4, (Ch, Ch, K, K))
    wxf = mkw(5, (Ch, Cin, K, K)); whf = mkw(6, (Ch, Ch, K, K))
    wxc = mkw(7, (Ch, Cin, K, K)); whc = mkw(8, (Ch, Ch, K, K))
    wxo = mkw(9, (Ch, Cin, K, K)); who = mkw(10, (Ch, Ch, K, K))
    bxi = mkw(11, (Ch,)); bxf = mkw(12, (Ch,))
    bxc = mkw(13, (Ch,)); bxo = mkw(14, (Ch,))

    # Peephole weights (init_hidden would zero these; use nonzero values to
    # exercise the full forward path).  They stay f32 end-to-end.
    wci = 0.1 * jax.random.normal(ks[15], (1, Ch, H, W), jnp.float32)
    wcf = 0.1 * jax.random.normal(ks[16], (1, Ch, H, W), jnp.float32)
    wco = 0.1 * jax.random.normal(ks[17], (1, Ch, H, W), jnp.float32)

    args = (x, h, c, wxi, whi, wxf, whf, wxc, whc, wxo, who,
            bxi, bxf, bxc, bxo, wci, wcf, wco)

    ch_out, cc_out = conv_lstm_cell(*args)
    jax.block_until_ready((ch_out, cc_out))

    ch_ref, cc_ref = _reference(*args)
    np.testing.assert_allclose(np.asarray(ch_out), np.asarray(ch_ref),
                               rtol=2e-3, atol=2e-3)
    np.testing.assert_allclose(np.asarray(cc_out), np.asarray(cc_ref),
                               rtol=2e-3, atol=2e-3)

    print("KERNEL_OK")
</pallas_src>

<mosaic_0001>
module attributes {stable_mosaic.version = 11 : i64} {
  func.func @_convlstm_kernel(%arg0: i32, %arg1: memref<1x4x256xf32, #tpu.memory_space<vmem>>, %arg2: memref<1x32x256xf32, #tpu.memory_space<vmem>>, %arg3: memref<1x32x256xf32, #tpu.memory_space<vmem>>, %arg4: memref<128x384xbf16, #tpu.memory_space<vmem>>, %arg5: memref<3x256xbf16, #tpu.memory_space<vmem>>, %arg6: memref<32x256xf32, #tpu.memory_space<vmem>>, %arg7: memref<32x256xf32, #tpu.memory_space<vmem>>, %arg8: memref<32x256xf32, #tpu.memory_space<vmem>>, %arg9: memref<1x32x256xf32, #tpu.memory_space<vmem>>, %arg10: memref<1x32x256xf32, #tpu.memory_space<vmem>>, %arg11: memref<36x290xbf16, #tpu.memory_space<vmem>>, %arg12: memref<384x256xbf16, #tpu.memory_space<vmem>>) attributes {dimension_semantics = [#tpu.dimension_semantics<parallel>], iteration_bounds = array<i64: 2>, scalar_prefetch = 0 : i64, scratch_operands = 2 : i64, tpu.core_type = #tpu.core_type<tc>, window_params = [{transform_indices = @transform_0, window_bounds = array<i64: 1, 4, 256>}, {transform_indices = @transform_1, window_bounds = array<i64: 1, 32, 256>}, {transform_indices = @transform_2, window_bounds = array<i64: 1, 32, 256>}, {pipeline_mode = #tpu.pipeline_mode<synchronous>, transform_indices = @transform_3, window_bounds = array<i64: 128, 384>}, {pipeline_mode = #tpu.pipeline_mode<synchronous>, transform_indices = @transform_4, window_bounds = array<i64: 3, 256>}, {pipeline_mode = #tpu.pipeline_mode<synchronous>, transform_indices = @transform_5, window_bounds = array<i64: 32, 256>}, {pipeline_mode = #tpu.pipeline_mode<synchronous>, transform_indices = @transform_6, window_bounds = array<i64: 32, 256>}, {pipeline_mode = #tpu.pipeline_mode<synchronous>, transform_indices = @transform_7, window_bounds = array<i64: 32, 256>}, {transform_indices = @transform_8, window_bounds = array<i64: 1, 32, 256>}, {transform_indices = @transform_9, window_bounds = array<i64: 1, 32, 256>}]} {
    %cst = arith.constant 0.000000e+00 : bf16
    %0 = vector.broadcast %cst : bf16 to vector<36x290xbf16>
    %c0 = arith.constant 0 : index
    %c0_0 = arith.constant 0 : index
    %1 = vector.load %arg11[%c0, %c0_0] : memref<36x290xbf16, #tpu.memory_space<vmem>>, vector<36x290xbf16>
    tpu.vector_store %arg11[%c0, %c0_0], %0 {strides = array<i32>} : memref<36x290xbf16, #tpu.memory_space<vmem>>, vector<36x290xbf16>,
    %c0_1 = arith.constant 0 : index
    %c0_2 = arith.constant 0 : index
    %c0_3 = arith.constant 0 : index
    %2 = vector.load %arg2[%c0_1, %c0_2, %c0_3] : memref<1x32x256xf32, #tpu.memory_space<vmem>>, vector<1x32x256xf32>
    %3 = vector.shape_cast %2 : vector<1x32x256xf32> to vector<32x256xf32>
    %4 = arith.truncf %3 : vector<32x256xf32> to vector<32x256xbf16>
    %c0_4 = arith.constant 0 : index
    %c17 = arith.constant 17 : index
    %5 = vector.load %arg11[%c0_4, %c17] : memref<36x290xbf16, #tpu.memory_space<vmem>>, vector<32x256xbf16>
    tpu.vector_store %arg11[%c0_4, %c17], %4 {strides = array<i32>} : memref<36x290xbf16, #tpu.memory_space<vmem>>, vector<32x256xbf16>,
    %c0_5 = arith.constant 0 : index
    %c0_6 = arith.constant 0 : index
    %c0_7 = arith.constant 0 : index
    %6 = vector.load %arg1[%c0_5, %c0_6, %c0_7] : memref<1x4x256xf32, #tpu.memory_space<vmem>>, vector<1x4x256xf32>
    %7 = vector.shape_cast %6 : vector<1x4x256xf32> to vector<4x256xf32>
    %8 = arith.truncf %7 : vector<4x256xf32> to vector<4x256xbf16>
    %c32 = arith.constant 32 : index
    %c17_8 = arith.constant 17 : index
    %9 = vector.load %arg11[%c32, %c17_8] : memref<36x290xbf16, #tpu.memory_space<vmem>>, vector<4x256xbf16>
    tpu.vector_store %arg11[%c32, %c17_8], %8 {strides = array<i32>} : memref<36x290xbf16, #tpu.memory_space<vmem>>, vector<4x256xbf16>,
    %10 = tpu.iota {dimensions = array<i32: 0>} : vector<60x256xi32>
    %c0_i32 = arith.constant 0 : i32
    %11 = vector.broadcast %c0_i32 : i32 to vector<60x256xi32>
    %12 = arith.cmpi eq, %10, %11 : vector<60x256xi32>
    %cst_9 = arith.constant 1.000000e+00 : f32
    %cst_10 = arith.constant 0.000000e+00 : f32
    %13 = vector.broadcast %cst_9 : f32 to vector<60x256xf32>
    %14 = vector.broadcast %cst_10 : f32 to vector<60x256xf32>
    %15 = arith.select %12, %13, %14 : vector<60x256xi1>, vector<60x256xf32>
    %16 = arith.truncf %15 : vector<60x256xf32> to vector<60x256xbf16>
    %c324 = arith.constant 324 : index
    %c0_11 = arith.constant 0 : index
    %17 = vector.load %arg12[%c324, %c0_11] : memref<384x256xbf16, #tpu.memory_space<vmem>>, vector<60x256xbf16>
    tpu.vector_store %arg12[%c324, %c0_11], %16 {strides = array<i32>} : memref<384x256xbf16, #tpu.memory_space<vmem>>, vector<60x256xbf16>,
    %c0_12 = arith.constant 0 : index
    %c0_13 = arith.constant 0 : index
    %18 = vector.load %arg5[%c0_12, %c0_13] : memref<3x256xbf16, #tpu.memory_space<vmem>>, vector<3x256xbf16>
    %19 = vector.extract_strided_slice %18 {offsets = [0, 0], sizes = [1, 256], strides = [1, 1]} : vector<3x256xbf16> to vector<1x256xbf16>
    %c0_14 = arith.constant 0 : index
    %c0_15 = arith.constant 0 : index
    %20 = vector.load %arg11[%c0_14, %c0_15] : memref<36x290xbf16, #tpu.memory_space<vmem>>, vector<36x256xbf16>
    %21 = vector.broadcast %19 : vector<1x256xbf16> to vector<36x256xbf16>
    %22 = arith.mulf %20, %21 : vector<36x256xbf16>
    %c0_16 = arith.constant 0 : index
    %c0_17 = arith.constant 0 : index
    %23 = vector.load %arg12[%c0_16, %c0_17] : memref<384x256xbf16, #tpu.memory_space<vmem>>, vector<36x256xbf16>
    tpu.vector_store %arg12[%c0_16, %c0_17], %22 {strides = array<i32>} : memref<384x256xbf16, #tpu.memory_space<vmem>>, vector<36x256xbf16>,
    %c0_18 = arith.constant 0 : index
    %c16 = arith.constant 16 : index
    %24 = vector.load %arg11[%c0_18, %c16] : memref<36x290xbf16, #tpu.memory_space<vmem>>, vector<36x256xbf16>
    %25 = vector.broadcast %19 : vector<1x256xbf16> to vector<36x256xbf16>
    %26 = arith.mulf %24, %25 : vector<36x256xbf16>
    %c108 = arith.constant 108 : index
    %c0_19 = arith.constant 0 : index
    %27 = vector.load %arg12[%c108, %c0_19] : memref<384x256xbf16, #tpu.memory_space<vmem>>, vector<36x256xbf16>
    tpu.vector_store %arg12[%c108, %c0_19], %26 {strides = array<i32>} : memref<384x256xbf16, #tpu.memory_space<vmem>>, vector<36x256xbf16>,
    %c0_20 = arith.constant 0 : index
    %c32_21 = arith.constant 32 : index
    %28 = vector.load %arg11[%c0_20, %c32_21] : memref<36x290xbf16, #tpu.memory_space<vmem>>, vector<36x256xbf16>
    %29 = vector.broadcast %19 : vector<1x256xbf16> to vector<36x256xbf16>
    %30 = arith.mulf %28, %29 : vector<36x256xbf16>
    %c216 = arith.constant 216 : index
    %c0_22 = arith.constant 0 : index
    %31 = vector.load %arg12[%c216, %c0_22] : memref<384x256xbf16, #tpu.memory_space<vmem>>, vector<36x256xbf16>
    tpu.vector_store %arg12[%c216, %c0_22], %30 {strides = array<i32>} : memref<384x256xbf16, #tpu.memory_space<vmem>>, vector<36x256xbf16>,
    %32 = vector.extract_strided_slice %18 {offsets = [1, 0], sizes = [1, 256], strides = [1, 1]} : vector<3x256xbf16> to vector<1x256xbf16>
    %c0_23 = arith.constant 0 : index
    %c1 = arith.constant 1 : index
    %33 = vector.load %arg11[%c0_23, %c1] : memref<36x290xbf16, #tpu.memory_space<vmem>>, vector<36x256xbf16>
    %34 = vector.broadcast %32 : vector<1x256xbf16> to vector<36x256xbf16>
    %35 = arith.mulf %33, %34 : vector<36x256xbf16>
    %c36 = arith.constant 36 : index
    %c0_24 = arith.constant 0 : index
    %36 = vector.load %arg12[%c36, %c0_24] : memref<384x256xbf16, #tpu.memory_space<vmem>>, vector<36x256xbf16>
    tpu.vector_store %arg12[%c36, %c0_24], %35 {strides = array<i32>} : memref<384x256xbf16, #tpu.memory_space<vmem>>, vector<36x256xbf16>,
    %c0_25 = arith.constant 0 : index
    %c17_26 = arith.constant 17 : index
    %37 = vector.load %arg11[%c0_25, %c17_26] : memref<36x290xbf16, #tpu.memory_space<vmem>>, vector<36x256xbf16>
    %38 = vector.broadcast %32 : vector<1x256xbf16> to vector<36x256xbf16>
    %39 = arith.mulf %37, %38 : vector<36x256xbf16>
    %c144 = arith.constant 144 : index
    %c0_27 = arith.constant 0 : index
    %40 = vector.load %arg12[%c144, %c0_27] : memref<384x256xbf16, #tpu.memory_space<vmem>>, vector<36x256xbf16>
    tpu.vector_store %arg12[%c144, %c0_27], %39 {strides = array<i32>} : memref<384x256xbf16, #tpu.memory_space<vmem>>, vector<36x256xbf16>,
    %c0_28 = arith.constant 0 : index
    %c33 = arith.constant 33 : index
    %41 = vector.load %arg11[%c0_28, %c33] : memref<36x290xbf16, #tpu.memory_space<vmem>>, vector<36x256xbf16>
    %42 = vector.broadcast %32 : vector<1x256xbf16> to vector<36x256xbf16>
    %43 = arith.mulf %41, %42 : vector<36x256xbf16>
    %c252 = arith.constant 252 : index
    %c0_29 = arith.constant 0 : index
    %44 = vector.load %arg12[%c252, %c0_29] : memref<384x256xbf16, #tpu.memory_space<vmem>>, vector<36x256xbf16>
    tpu.vector_store %arg12[%c252, %c0_29], %43 {strides = array<i32>} : memref<384x256xbf16, #tpu.memory_space<vmem>>, vector<36x256xbf16>,
    %45 = vector.extract_strided_slice %18 {offsets = [2, 0], sizes = [1, 256], strides = [1, 1]} : vector<3x256xbf16> to vector<1x256xbf16>
    %c0_30 = arith.constant 0 : index
    %c2 = arith.constant 2 : index
    %46 = vector.load %arg11[%c0_30, %c2] : memref<36x290xbf16, #tpu.memory_space<vmem>>, vector<36x256xbf16>
    %47 = vector.broadcast %45 : vector<1x256xbf16> to vector<36x256xbf16>
    %48 = arith.mulf %46, %47 : vector<36x256xbf16>
    %c72 = arith.constant 72 : index
    %c0_31 = arith.constant 0 : index
    %49 = vector.load %arg12[%c72, %c0_31] : memref<384x256xbf16, #tpu.memory_space<vmem>>, vector<36x256xbf16>
    tpu.vector_store %arg12[%c72, %c0_31], %48 {strides = array<i32>} : memref<384x256xbf16, #tpu.memory_space<vmem>>, vector<36x256xbf16>,
    %c0_32 = arith.constant 0 : index
    %c18 = arith.constant 18 : index
    %50 = vector.load %arg11[%c0_32, %c18] : memref<36x290xbf16, #tpu.memory_space<vmem>>, vector<36x256xbf16>
    %51 = vector.broadcast %45 : vector<1x256xbf16> to vector<36x256xbf16>
    %52 = arith.mulf %50, %51 : vector<36x256xbf16>
    %c180 = arith.constant 180 : index
    %c0_33 = arith.constant 0 : index
    %53 = vector.load %arg12[%c180, %c0_33] : memref<384x256xbf16, #tpu.memory_space<vmem>>, vector<36x256xbf16>
    tpu.vector_store %arg12[%c180, %c0_33], %52 {strides = array<i32>} : memref<384x256xbf16, #tpu.memory_space<vmem>>, vector<36x256xbf16>,
    %c0_34 = arith.constant 0 : index
    %c34 = arith.constant 34 : index
    %54 = vector.load %arg11[%c0_34, %c34] : memref<36x290xbf16, #tpu.memory_space<vmem>>, vector<36x256xbf16>
    %55 = vector.broadcast %45 : vector<1x256xbf16> to vector<36x256xbf16>
    %56 = arith.mulf %54, %55 : vector<36x256xbf16>
    %c288 = arith.constant 288 : index
    %c0_35 = arith.constant 0 : index
    %57 = vector.load %arg12[%c288, %c0_35] : memref<384x256xbf16, #tpu.memory_space<vmem>>, vector<36x256xbf16>
    tpu.vector_store %arg12[%c288, %c0_35], %56 {strides = array<i32>} : memref<384x256xbf16, #tpu.memory_space<vmem>>, vector<36x256xbf16>,
    %c0_36 = arith.constant 0 : index
    %c0_37 = arith.constant 0 : index
    %58 = vector.load %arg4[%c0_36, %c0_37] : memref<128x384xbf16, #tpu.memory_space<vmem>>, vector<128x384xbf16>
    %c0_38 = arith.constant 0 : index
    %c0_39 = arith.constant 0 : index
    %59 = vector.load %arg12[%c0_38, %c0_39] : memref<384x256xbf16, #tpu.memory_space<vmem>>, vector<384x256xbf16>
    %cst_40 = arith.constant dense<0.000000e+00> : vector<128x256xf32>
    %60 = tpu.matmul %58, %59, %cst_40 {dimension_numbers = #tpu.dot_dimension_numbers<[1], [0], [0], [1], [0, 0, 1, 1], [], []>} : vector<128x384xbf16>, vector<384x256xbf16>, vector<128x256xf32> -> vector<128x256xf32>
    %61 = vector.extract_strided_slice %60 {offsets = [0, 0], sizes = [32, 256], strides = [1, 1]} : vector<128x256xf32> to vector<32x256xf32>
    %62 = vector.extract_strided_slice %60 {offsets = [32, 0], sizes = [32, 256], strides = [1, 1]} : vector<128x256xf32> to vector<32x256xf32>
    %63 = vector.extract_strided_slice %60 {offsets = [64, 0], sizes = [32, 256], strides = [1, 1]} : vector<128x256xf32> to vector<32x256xf32>
    %64 = vector.extract_strided_slice %60 {offsets = [96, 0], sizes = [32, 256], strides = [1, 1]} : vector<128x256xf32> to vector<32x256xf32>
    %c0_41 = arith.constant 0 : index
    %c0_42 = arith.constant 0 : index
    %c0_43 = arith.constant 0 : index
    %65 = vector.load %arg3[%c0_41, %c0_42, %c0_43] : memref<1x32x256xf32, #tpu.memory_space<vmem>>, vector<1x32x256xf32>
    %66 = vector.shape_cast %65 : vector<1x32x256xf32> to vector<32x256xf32>
    %c0_44 = arith.constant 0 : index
    %c0_45 = arith.constant 0 : index
    %67 = vector.load %arg6[%c0_44, %c0_45] : memref<32x256xf32, #tpu.memory_space<vmem>>, vector<32x256xf32>
    %68 = arith.mulf %66, %67 : vector<32x256xf32>
    %69 = arith.addf %61, %68 : vector<32x256xf32>
    %70 = arith.negf %69 : vector<32x256xf32>
    %71 = math.exp %70 : vector<32x256xf32>
    %cst_46 = arith.constant 1.000000e+00 : f32
    %72 = vector.broadcast %cst_46 : f32 to vector<32x256xf32>
    %73 = arith.addf %72, %71 : vector<32x256xf32>
    %74 = arith.divf %72, %73 : vector<32x256xf32>
    %c0_47 = arith.constant 0 : index
    %c0_48 = arith.constant 0 : index
    %75 = vector.load %arg7[%c0_47, %c0_48] : memref<32x256xf32, #tpu.memory_space<vmem>>, vector<32x256xf32>
    %76 = arith.mulf %66, %75 : vector<32x256xf32>
    %77 = arith.addf %62, %76 : vector<32x256xf32>
    %78 = arith.negf %77 : vector<32x256xf32>
    %79 = math.exp %78 : vector<32x256xf32>
    %cst_49 = arith.constant 1.000000e+00 : f32
    %80 = vector.broadcast %cst_49 : f32 to vector<32x256xf32>
    %81 = arith.addf %80, %79 : vector<32x256xf32>
    %82 = arith.divf %80, %81 : vector<32x256xf32>
    %83 = arith.mulf %82, %66 : vector<32x256xf32>
    %cst_50 = arith.constant 0.000000e+00 : f32
    %84 = vector.broadcast %cst_50 : f32 to vector<32x256xf32>
    %85 = arith.maximumf %63, %84 : vector<32x256xf32>
    %86 = arith.mulf %74, %85 : vector<32x256xf32>
    %87 = arith.addf %83, %86 : vector<32x256xf32>
    %c0_51 = arith.constant 0 : index
    %c0_52 = arith.constant 0 : index
    %88 = vector.load %arg8[%c0_51, %c0_52] : memref<32x256xf32, #tpu.memory_space<vmem>>, vector<32x256xf32>
    %89 = arith.mulf %87, %88 : vector<32x256xf32>
    %90 = arith.addf %64, %89 : vector<32x256xf32>
    %91 = arith.negf %90 : vector<32x256xf32>
    %92 = math.exp %91 : vector<32x256xf32>
    %cst_53 = arith.constant 1.000000e+00 : f32
    %93 = vector.broadcast %cst_53 : f32 to vector<32x256xf32>
    %94 = arith.addf %93, %92 : vector<32x256xf32>
    %95 = arith.divf %93, %94 : vector<32x256xf32>
    %cst_54 = arith.constant 0.000000e+00 : f32
    %96 = vector.broadcast %cst_54 : f32 to vector<32x256xf32>
    %97 = arith.maximumf %87, %96 : vector<32x256xf32>
    %98 = arith.mulf %95, %97 : vector<32x256xf32>
    %99 = vector.shape_cast %98 : vector<32x256xf32> to vector<1x32x256xf32>
    %c0_55 = arith.constant 0 : index
    %c0_56 = arith.constant 0 : index
    %c0_57 = arith.constant 0 : index
    %100 = vector.load %arg9[%c0_55, %c0_56, %c0_57] : memref<1x32x256xf32, #tpu.memory_space<vmem>>, vector<1x32x256xf32>
    tpu.vector_store %arg9[%c0_55, %c0_56, %c0_57], %99 {strides = array<i32>} : memref<1x32x256xf32, #tpu.memory_space<vmem>>, vector<1x32x256xf32>,
    %101 = vector.shape_cast %87 : vector<32x256xf32> to vector<1x32x256xf32>
    %c0_58 = arith.constant 0 : index
    %c0_59 = arith.constant 0 : index
    %c0_60 = arith.constant 0 : index
    %102 = vector.load %arg10[%c0_58, %c0_59, %c0_60] : memref<1x32x256xf32, #tpu.memory_space<vmem>>, vector<1x32x256xf32>
    tpu.vector_store %arg10[%c0_58, %c0_59, %c0_60], %101 {strides = array<i32>} : memref<1x32x256xf32, #tpu.memory_space<vmem>>, vector<1x32x256xf32>,
    return
  }
  func.func @transform_0(%arg0: i32) -> (i32, i32, i32) {
    %c0_i32 = arith.constant 0 : i32
    %c0_i32_0 = arith.constant 0 : i32
    %c0_i32_1 = arith.constant 0 : i32
    return %arg0, %c0_i32, %c0_i32_0 : i32, i32, i32
  }
  func.func @transform_1(%arg0: i32) -> (i32, i32, i32) {
    %c0_i32 = arith.constant 0 : i32
    %c0_i32_0 = arith.constant 0 : i32
    %c0_i32_1 = arith.constant 0 : i32
    return %arg0, %c0_i32, %c0_i32_0 : i32, i32, i32
  }
  func.func @transform_2(%arg0: i32) -> (i32, i32, i32) {
    %c0_i32 = arith.constant 0 : i32
    %c0_i32_0 = arith.constant 0 : i32
    %c0_i32_1 = arith.constant 0 : i32
    return %arg0, %c0_i32, %c0_i32_0 : i32, i32, i32
  }
  func.func @transform_3(%arg0: i32) -> (i32, i32) {
    %c0_i32 = arith.constant 0 : i32
    %c0_i32_0 = arith.constant 0 : i32
    %c0_i32_1 = arith.constant 0 : i32
    return %c0_i32, %c0_i32_0 : i32, i32
  }
  func.func @transform_4(%arg0: i32) -> (i32, i32) {
    %c0_i32 = arith.constant 0 : i32
    %c0_i32_0 = arith.constant 0 : i32
    %c0_i32_1 = arith.constant 0 : i32
    return %c0_i32, %c0_i32_0 : i32, i32
  }
  func.func @transform_5(%arg0: i32) -> (i32, i32) {
    %c0_i32 = arith.constant 0 : i32
    %c0_i32_0 = arith.constant 0 : i32
    %c0_i32_1 = arith.constant 0 : i32
    return %c0_i32, %c0_i32_0 : i32, i32
  }
  func.func @transform_6(%arg0: i32) -> (i32, i32) {
    %c0_i32 = arith.constant 0 : i32
    %c0_i32_0 = arith.constant 0 : i32
    %c0_i32_1 = arith.constant 0 : i32
    return %c0_i32, %c0_i32_0 : i32, i32
  }
  func.func @transform_7(%arg0: i32) -> (i32, i32) {
    %c0_i32 = arith.constant 0 : i32
    %c0_i32_0 = arith.constant 0 : i32
    %c0_i32_1 = arith.constant 0 : i32
    return %c0_i32, %c0_i32_0 : i32, i32
  }
  func.func @transform_8(%arg0: i32) -> (i32, i32, i32) {
    %c0_i32 = arith.constant 0 : i32
    %c0_i32_0 = arith.constant 0 : i32
    %c0_i32_1 = arith.constant 0 : i32
    return %arg0, %c0_i32, %c0_i32_0 : i32, i32, i32
  }
  func.func @transform_9(%arg0: i32) -> (i32, i32, i32) {
    %c0_i32 = arith.constant 0 : i32
    %c0_i32_0 = arith.constant 0 : i32
    %c0_i32_1 = arith.constant 0 : i32
    return %arg0, %c0_i32, %c0_i32_0 : i32, i32, i32
  }
}

</mosaic_0001>

<llo_original>
// kernel: conv_lstm_cell.1
$region0: #{conv_lstm_cell.1}
  #allocation0 [shape = 'u32[]', space=smem, size = 0x4, offset = 0x4, fixed_abs, tag = 'smem constant byte address 0x4 - core index']
  #allocation1 [shape = 'u32[144,128]{1,0:T(1,128)}', space=vmem, size = 0x12000, scoped, tag = 'internal scratch']
  #allocation2 [shape = 'bf16[36,290]{1,0:T(8,128)(2,1)}', space=vmem, size = 0x7800, scoped, tag = 'scratch operand']
  #allocation3 [shape = 'bf16[384,256]{1,0:T(16,128)(2,1)}', space=vmem, size = 0x30000, scoped, tag = 'scratch operand']
  %s0 = inlined_call_operand.hbm [shape: f32[2,4,256], index: 0, kind: input, shape index: {}]
  %s1 = inlined_call_operand.hbm [shape: f32[2,32,256], index: 1, kind: input, shape index: {}]
  %s2 = inlined_call_operand.hbm [shape: f32[2,32,256], index: 2, kind: input, shape index: {}]
  %s3 = inlined_call_operand.hbm [shape: bf16[128,384], index: 3, kind: input, shape index: {}]
  %s4 = inlined_call_operand.hbm [shape: bf16[3,256], index: 4, kind: input, shape index: {}]
  %s5 = inlined_call_operand.hbm [shape: f32[32,256], index: 5, kind: input, shape index: {}]
  %s6 = inlined_call_operand.hbm [shape: f32[32,256], index: 6, kind: input, shape index: {}]
  %s7 = inlined_call_operand.hbm [shape: f32[32,256], index: 7, kind: input, shape index: {}]
  %s8 = inlined_call_operand.hbm [shape: f32[2,32,256], index: 8, kind: output, shape index: {0}]
  %s9 = inlined_call_operand.hbm [shape: f32[2,32,256], index: 9, kind: output, shape index: {1}]
  %10 = xla_tuple %s8, %s9
  %s11 = sld [smem:[#allocation0]]
  $region105: #{conv_lstm_cell.1} parent=0
    _
  %s13 = ssub.s32 1, %s11
  %s14 = scalar_select 0, %s13, %s11
  $region1: #{conv_lstm_cell.1} parent=0
    #allocation4 [shape = 'u8[8192]{0}', space=vmem, size = 0x2000, scoped, tag = 'input window, operand 0']
    #allocation5 [shape = 's32[2]{0}', space=sflag, size = 0x8, scoped, tag = 'scoped memory for conv_lstm_cell.1']
    #allocation6 [shape = 's32[2]{0}', space=sflag, size = 0x8, scoped, tag = 'scoped memory for conv_lstm_cell.1']
    #allocation7 [shape = 'u8[65536]{0}', space=vmem, size = 0x10000, scoped, tag = 'input window, operand 1']
    #allocation8 [shape = 's32[2]{0}', space=sflag, size = 0x8, scoped, tag = 'scoped memory for conv_lstm_cell.1']
    #allocation9 [shape = 'u8[65536]{0}', space=vmem, size = 0x10000, scoped, tag = 'input window, operand 2']
    #allocation10 [shape = 'u8[98304]{0}', space=vmem, size = 0x18000, scoped, tag = 'input window, operand 3, single buffered']
    #allocation11 [shape = 's32[1]{0}', space=sflag, size = 0x4, scoped, tag = 'scoped memory for conv_lstm_cell.1']
    #allocation12 [shape = 'u8[2048]{0}', space=vmem, size = 0x800, scoped, tag = 'input window, operand 4, single buffered']
    #allocation13 [shape = 'u8[32768]{0}', space=vmem, size = 0x8000, scoped, tag = 'input window, operand 5, single buffered']
    #allocation14 [shape = 's32[1]{0}', space=sflag, size = 0x4, scoped, tag = 'scoped memory for conv_lstm_cell.1']
    #allocation15 [shape = 'u8[32768]{0}', space=vmem, size = 0x8000, scoped, tag = 'input window, operand 6, single buffered']
    #allocation16 [shape = 'u8[32768]{0}', space=vmem, size = 0x8000, scoped, tag = 'input window, operand 7, single buffered']
    #allocation17 [shape = 's32[1]{0}', space=sflag, size = 0x4, scoped, tag = 'scoped memory for conv_lstm_cell.1']
    #allocation18 [shape = 'u8[65536]{0}', space=vmem, size = 0x10000, scoped, tag = 'output window, operand 0']
    #allocation19 [shape = 'u8[65536]{0}', space=vmem, size = 0x10000, scoped, tag = 'output window, operand 1']
    #allocation20 [shape = 's32[2]{0}', space=sflag, size = 0x8, scoped, tag = 'scoped memory for conv_lstm_cell.1']
    %15 = vsyncpa [#allocation5], 0
    %s16 = scalar_lea.sflag [#allocation5], 1
    %17 = vsyncpa %s16, 0
    %18 = vsyncpa [#allocation8], 0
    %s19 = scalar_lea.sflag [#allocation8], 1
    %20 = vsyncpa %s19, 0
    %21 = vsyncpa [#allocation11], 0
    %22 = vsyncpa [#allocation14], 0
    %23 = vsyncpa [#allocation17], 0
    %24 = vsyncpa [#allocation6], 0
    %s25 = scalar_lea.sflag [#allocation6], 1
    %26 = vsyncpa %s25, 0
    %27 = vsyncpa [#allocation20], 0
    %s28 = scalar_lea.sflag [#allocation20], 1
    %29 = vsyncpa %s28, 0
    loop: start=0, step=1, limit=4
    $region2: #{conv_lstm_cell.1} parent=1 // loop_pre_header
      _
    $region3: #{conv_lstm_cell.1} parent=1 // loop_header
      %s31 = sphi 0, %s35
      %p32 = scmp.ge.s32.totalorder %s31, 4
      %s41 = sphi 0, %s43
      %s44 = sphi 0, %s41
      %s45 = sphi 0, %s44
      %s61 = sphi 0, %s45
      %s67 = sphi 0, %s69
      %s70 = sphi 0, %s67
      %s71 = sphi 0, %s70
      %s87 = sphi 0, %s71
      %s93 = sphi 0, %s95
      %s96 = sphi 0, %s93
      %s97 = sphi 0, %s96
      %s113 = sphi 0, %s97
      %s117 = sphi 0, %s117
      %s119 = sphi 0, %s117
      %s120 = sphi 0, %s119
      %s134 = sphi 0, %s120
      %s138 = sphi 0, %s138
      %s140 = sphi 0, %s138
      %s141 = sphi 0, %s140
      %s155 = sphi 0, %s141
      %s159 = sphi 0, %s159
      %s161 = sphi 0, %s159
      %s162 = sphi 0, %s161
      %s176 = sphi 0, %s162
      %s180 = sphi 0, %s180
      %s182 = sphi 0, %s180
      %s183 = sphi 0, %s182
      %s197 = sphi 0, %s183
      %s201 = sphi 0, %s201
      %s203 = sphi 0, %s201
      %s204 = sphi 0, %s203
      %s218 = sphi 0, %s204
      %s224 = sphi 0, %s226
      %s227 = sphi 0, %s224
      %s228 = sphi 0, %s227
      %s244 = sphi 0, %s228
      %s250 = sphi 0, %s252
      %s253 = sphi 0, %s250
      %s254 = sphi 0, %s253
      %s270 = sphi 0, %s254
    $region4: #{conv_lstm_cell.1} parent=1 // loop_header_branch
      %34 = sbr.rel (%p32) target = $region8
    $region5: #{conv_lstm_cell.1} parent=1 // loop_body
      %s36 = ssub.s32 %s31, 1
      %s37 = ssub.s32 %s31, 2
      %s38 = sadd.s32 %s31, 1
      %s39 = ssub.s32 %s31, %s38
      %p40 = scmp.eq.s32.totalorder %s39, 0
      %s42 = sadd.s32 %s41, 1
      %s43 = scalar_select %p40, %s41, %s42
      %p46 = pneg %p40
      %p47 = scmp.eq.s32.totalorder %s31, 1
      %p48 = por %p46, %p47
      %p49 = scmp.ne.s32.totalorder %s41, %s44
      %p50 = scmp.eq.s32.totalorder %s31, 0
      %p51 = por %p49, %p50
      %p52 = scmp.ne.s32.totalorder %s41, %s44
      %p53 = scmp.eq.s32.totalorder %s36, 1
      %p54 = por %p52, %p53
      %p55 = scmp.ne.s32.totalorder %s44, %s45
      %p56 = scmp.eq.s32.totalorder %s36, 0
      %p57 = por %p55, %p56
      %p58 = scmp.ne.s32.totalorder %s44, %s45
      %p59 = scmp.eq.s32.totalorder %s37, 1
      %p60 = por %p58, %p59
      %p62 = scmp.ne.s32.totalorder %s45, %s61
      %p63 = scmp.eq.s32.totalorder %s37, 0
      %p64 = por %p62, %p63
      %s65 = ssub.s32 %s31, %s38
      %p66 = scmp.eq.s32.totalorder %s65, 0
      %s68 = sadd.s32 %s67, 1
      %s69 = scalar_select %p66, %s67, %s68
      %p72 = pneg %p66
      %p73 = scmp.eq.s32.totalorder %s31, 1
      %p74 = por %p72, %p73
      %p75 = scmp.ne.s32.totalorder %s67, %s70
      %p76 = scmp.eq.s32.totalorder %s31, 0
      %p77 = por %p75, %p76
      %p78 = scmp.ne.s32.totalorder %s67, %s70
      %p79 = scmp.eq.s32.totalorder %s36, 1
      %p80 = por %p78, %p79
      %p81 = scmp.ne.s32.totalorder %s70, %s71
      %p82 = scmp.eq.s32.totalorder %s36, 0
      %p83 = por %p81, %p82
      %p84 = scmp.ne.s32.totalorder %s70, %s71
      %p85 = scmp.eq.s32.totalorder %s37, 1
      %p86 = por %p84, %p85
      %p88 = scmp.ne.s32.totalorder %s71, %s87
      %p89 = scmp.eq.s32.totalorder %s37, 0
      %p90 = por %p88, %p89
      %s91 = ssub.s32 %s31, %s38
      %p92 = scmp.eq.s32.totalorder %s91, 0
      %s94 = sadd.s32 %s93, 1
      %s95 = scalar_select %p92, %s93, %s94
      %p98 = pneg %p92
      %p99 = scmp.eq.s32.totalorder %s31, 1
      %p100 = por %p98, %p99
      %p101 = scmp.ne.s32.totalorder %s93, %s96
      %p102 = scmp.eq.s32.totalorder %s31, 0
      %p103 = por %p101, %p102
      %p104 = scmp.ne.s32.totalorder %s93, %s96
      %p105 = scmp.eq.s32.totalorder %s36, 1
      %p106 = por %p104, %p105
      %p107 = scmp.ne.s32.totalorder %s96, %s97
      %p108 = scmp.eq.s32.totalorder %s36, 0
      %p109 = por %p107, %p108
      %p110 = scmp.ne.s32.totalorder %s96, %s97
      %p111 = scmp.eq.s32.totalorder %s37, 1
      %p112 = por %p110, %p111
      %p114 = scmp.ne.s32.totalorder %s97, %s113
      %p115 = scmp.eq.s32.totalorder %s37, 0
      %p116 = por %p114, %p115
      %s118 = sadd.s32 %s117, 1
      %p121 = scmp.eq.s32.totalorder %s31, 1
      %p122 = scmp.ne.s32.totalorder %s117, %s119
      %p123 = scmp.eq.s32.totalorder %s31, 0
      %p124 = por %p122, %p123
      %p125 = scmp.ne.s32.totalorder %s117, %s119
      %p126 = scmp.eq.s32.totalorder %s36, 1
      %p127 = por %p125, %p126
      %p128 = scmp.ne.s32.totalorder %s119, %s120
      %p129 = scmp.eq.s32.totalorder %s36, 0
      %p130 = por %p128, %p129
      %p131 = scmp.ne.s32.totalorder %s119, %s120
      %p132 = scmp.eq.s32.totalorder %s37, 1
      %p133 = por %p131, %p132
      %p135 = scmp.ne.s32.totalorder %s120, %s134
      %p136 = scmp.eq.s32.totalorder %s37, 0
      %p137 = por %p135, %p136
      %s139 = sadd.s32 %s138, 1
      %p142 = scmp.eq.s32.totalorder %s31, 1
      %p143 = scmp.ne.s32.totalorder %s138, %s140
      %p144 = scmp.eq.s32.totalorder %s31, 0
      %p145 = por %p143, %p144
      %p146 = scmp.ne.s32.totalorder %s138, %s140
      %p147 = scmp.eq.s32.totalorder %s36, 1
      %p148 = por %p146, %p147
      %p149 = scmp.ne.s32.totalorder %s140, %s141
      %p150 = scmp.eq.s32.totalorder %s36, 0
      %p151 = por %p149, %p150
      %p152 = scmp.ne.s32.totalorder %s140, %s141
      %p153 = scmp.eq.s32.totalorder %s37, 1
      %p154 = por %p152, %p153
      %p156 = scmp.ne.s32.totalorder %s141, %s155
      %p157 = scmp.eq.s32.totalorder %s37, 0
      %p158 = por %p156, %p157
      %s160 = sadd.s32 %s159, 1
      %p163 = scmp.eq.s32.totalorder %s31, 1
      %p164 = scmp.ne.s32.totalorder %s159, %s161
      %p165 = scmp.eq.s32.totalorder %s31, 0
      %p166 = por %p164, %p165
      %p167 = scmp.ne.s32.totalorder %s159, %s161
      %p168 = scmp.eq.s32.totalorder %s36, 1
      %p169 = por %p167, %p168
      %p170 = scmp.ne.s32.totalorder %s161, %s162
      %p171 = scmp.eq.s32.totalorder %s36, 0
      %p172 = por %p170, %p171
      %p173 = scmp.ne.s32.totalorder %s161, %s162
      %p174 = scmp.eq.s32.totalorder %s37, 1
      %p175 = por %p173, %p174
      %p177 = scmp.ne.s32.totalorder %s162, %s176
      %p178 = scmp.eq.s32.totalorder %s37, 0
      %p179 = por %p177, %p178
      %s181 = sadd.s32 %s180, 1
      %p184 = scmp.eq.s32.totalorder %s31, 1
      %p185 = scmp.ne.s32.totalorder %s180, %s182
      %p186 = scmp.eq.s32.totalorder %s31, 0
      %p187 = por %p185, %p186
      %p188 = scmp.ne.s32.totalorder %s180, %s182
      %p189 = scmp.eq.s32.totalorder %s36, 1
      %p190 = por %p188, %p189
      %p191 = scmp.ne.s32.totalorder %s182, %s183
      %p192 = scmp.eq.s32.totalorder %s36, 0
      %p193 = por %p191, %p192
      %p194 = scmp.ne.s32.totalorder %s182, %s183
      %p195 = scmp.eq.s32.totalorder %s37, 1
      %p196 = por %p194, %p195
      %p198 = scmp.ne.s32.totalorder %s183, %s197
      %p199 = scmp.eq.s32.totalorder %s37, 0
      %p200 = por %p198, %p199
      %s202 = sadd.s32 %s201, 1
      %p205 = scmp.eq.s32.totalorder %s31, 1
      %p206 = scmp.ne.s32.totalorder %s201, %s203
      %p207 = scmp.eq.s32.totalorder %s31, 0
      %p208 = por %p206, %p207
      %p209 = scmp.ne.s32.totalorder %s201, %s203
      %p210 = scmp.eq.s32.totalorder %s36, 1
      %p211 = por %p209, %p210
      %p212 = scmp.ne.s32.totalorder %s203, %s204
      %p213 = scmp.eq.s32.totalorder %s36, 0
      %p214 = por %p212, %p213
      %p215 = scmp.ne.s32.totalorder %s203, %s204
      %p216 = scmp.eq.s32.totalorder %s37, 1
      %p217 = por %p215, %p216
      %p219 = scmp.ne.s32.totalorder %s204, %s218
      %p220 = scmp.eq.s32.totalorder %s37, 0
      %p221 = por %p219, %p220
      %s222 = ssub.s32 %s31, %s38
      %p223 = scmp.eq.s32.totalorder %s222, 0
      %s225 = sadd.s32 %s224, 1
      %s226 = scalar_select %p223, %s224, %s225
      %p229 = pneg %p223
      %p230 = scmp.eq.s32.totalorder %s31, 1
      %p231 = por %p229, %p230
      %p232 = scmp.ne.s32.totalorder %s224, %s227
      %p233 = scmp.eq.s32.totalorder %s31, 0
      %p234 = por %p232, %p233
      %p235 = scmp.ne.s32.totalorder %s224, %s227
      %p236 = scmp.eq.s32.totalorder %s36, 1
      %p237 = por %p235, %p236
      %p238 = scmp.ne.s32.totalorder %s227, %s228
      %p239 = scmp.eq.s32.totalorder %s36, 0
      %p240 = por %p238, %p239
      %p241 = scmp.ne.s32.totalorder %s227, %s228
      %p242 = scmp.eq.s32.totalorder %s37, 1
      %p243 = por %p241, %p242
      %p245 = scmp.ne.s32.totalorder %s228, %s244
      %p246 = scmp.eq.s32.totalorder %s37, 0
      %p247 = por %p245, %p246
      %s248 = ssub.s32 %s31, %s38
      %p249 = scmp.eq.s32.totalorder %s248, 0
      %s251 = sadd.s32 %s250, 1
      %s252 = scalar_select %p249, %s250, %s251
      %p255 = pneg %p249
      %p256 = scmp.eq.s32.totalorder %s31, 1
      %p257 = por %p255, %p256
      %p258 = scmp.ne.s32.totalorder %s250, %s253
      %p259 = scmp.eq.s32.totalorder %s31, 0
      %p260 = por %p258, %p259
      %p261 = scmp.ne.s32.totalorder %s250, %s253
      %p262 = scmp.eq.s32.totalorder %s36, 1
      %p263 = por %p261, %p262
      %p264 = scmp.ne.s32.totalorder %s253, %s254
      %p265 = scmp.eq.s32.totalorder %s36, 0
      %p266 = por %p264, %p265
      %p267 = scmp.ne.s32.totalorder %s253, %s254
      %p268 = scmp.eq.s32.totalorder %s37, 1
      %p269 = por %p267, %p268
      %p271 = scmp.ne.s32.totalorder %s254, %s270
      %p272 = scmp.eq.s32.totalorder %s37, 0
      %p273 = por %p271, %p272
      %p274 = scmp.le.s32.totalorder 1, %s31
      %p275 = scmp.lt.s32.totalorder %s31, 3
      %p276 = pnand %p274, %p275
      %p277 = pneg %p276
      // Predicated region
      $region9: #{conv_lstm_cell.1} parent=5 // pred_check
        _
      $region10: #{conv_lstm_cell.1} parent=5 // pred_check_branch
        %279 = sbr.rel (%p276) target = $region12
      $region11: #{conv_lstm_cell.1} parent=5 // pred_region
        %s280 = ssub.s32 %s31, 1
        // Predicated region
        $region13: #{conv_lstm_cell.1} parent=11 // pred_check
          %p281 = pneg %p130
        $region14: #{conv_lstm_cell.1} parent=11 // pred_check_branch
          %283 = sbr.rel (%p281) target = $region16
        $region15: #{conv_lstm_cell.1} parent=11 // pred_region
          %s285 = ssub.s32 3072, 3072
          %286 = vsyncadd [#allocation11], %s285
          %s287 = sshll.u32 [#allocation10], 4
          %s288 = int_to_ptr.vmem [resolvable:$true] %s287
          %293 = dma.hbm_to_vmem [thread:$0]  %s3, 3072, %s288, [#allocation11], 192, 192, 12
        $region16: #{conv_lstm_cell.1} parent=11 // pred_fallthru
          _
        // Predicated region
        $region17: #{conv_lstm_cell.1} parent=11 // pred_check
          %p294 = pneg %p151
        $region18: #{conv_lstm_cell.1} parent=11 // pred_check_branch
          %296 = sbr.rel (%p294) target = $region20
        $region19: #{conv_lstm_cell.1} parent=11 // pred_region
          %s298 = ssub.s32 64, 64
          %299 = vsyncadd [#allocation11], %s298
          %s301 = sshll.u32 [#allocation12], 4
          %s302 = int_to_ptr.vmem [resolvable:$true] %s301
          %304 = dma.hbm_to_vmem [thread:$0]  %s4, 64, %s302, [#allocation11]
        $region20: #{conv_lstm_cell.1} parent=11 // pred_fallthru
          _
        // Predicated region
        $region21: #{conv_lstm_cell.1} parent=11 // pred_check
          %p305 = pneg %p172
        $region22: #{conv_lstm_cell.1} parent=11 // pred_check_branch
          %307 = sbr.rel (%p305) target = $region24
        $region23: #{conv_lstm_cell.1} parent=11 // pred_region
          %s309 = ssub.s32 1024, 1024
          %310 = vsyncadd [#allocation14], %s309
          %s311 = sshll.u32 [#allocation13], 4
          %s312 = int_to_ptr.vmem [resolvable:$true] %s311
          %317 = dma.hbm_to_vmem [thread:$0]  %s5, 1024, %s312, [#allocation14], 256, 256, 16
        $region24: #{conv_lstm_cell.1} parent=11 // pred_fallthru
          _
        // Predicated region
        $region25: #{conv_lstm_cell.1} parent=11 // pred_check
          %p318 = pneg %p193
        $region26: #{conv_lstm_cell.1} parent=11 // pred_check_branch
          %320 = sbr.rel (%p318) target = $region28
        $region27: #{conv_lstm_cell.1} parent=11 // pred_region
          %s322 = ssub.s32 1024, 1024
          %323 = vsyncadd [#allocation14], %s322
          %s324 = sshll.u32 [#allocation15], 4
          %s325 = int_to_ptr.vmem [resolvable:$true] %s324
          %330 = dma.hbm_to_vmem [thread:$0]  %s6, 1024, %s325, [#allocation14], 256, 256, 16
        $region28: #{conv_lstm_cell.1} parent=11 // pred_fallthru
          _
        // Predicated region
        $region29: #{conv_lstm_cell.1} parent=11 // pred_check
          %p331 = pneg %p214
        $region30: #{conv_lstm_cell.1} parent=11 // pred_check_branch
          %333 = sbr.rel (%p331) target = $region32
        $region31: #{conv_lstm_cell.1} parent=11 // pred_region
          %s335 = ssub.s32 1024, 1024
          %336 = vsyncadd [#allocation17], %s335
          %s337 = sshll.u32 [#allocation16], 4
          %s338 = int_to_ptr.vmem [resolvable:$true] %s337
          %343 = dma.hbm_to_vmem [thread:$0]  %s7, 1024, %s338, [#allocation17], 256, 256, 16
        $region32: #{conv_lstm_cell.1} parent=11 // pred_fallthru
          _
      $region12: #{conv_lstm_cell.1} parent=5 // pred_fallthru
        _
      %p344 = scmp.lt.s32.totalorder %s31, 2
      // Predicated region
      $region33: #{conv_lstm_cell.1} parent=5 // pred_check
        %p345 = pneg %p344
      $region34: #{conv_lstm_cell.1} parent=5 // pred_check_branch
        %347 = sbr.rel (%p345) target = $region36
      $region35: #{conv_lstm_cell.1} parent=5 // pred_region
        // Predicated region
        $region37: #{conv_lstm_cell.1} parent=35 // pred_check
          %p348 = pneg %p51
        $region38: #{conv_lstm_cell.1} parent=35 // pred_check_branch
          %350 = sbr.rel (%p348) target = $region40
        $region39: #{conv_lstm_cell.1} parent=35 // pred_region
          %s351 = sand.u32 %s41, 1
          %s352 = scalar_lea.sflag [#allocation5], %s351
          %s353 = sand.u32 %s41, 1
          %s354 = smul.addr %s353, 8
          %s355 = scalar_lea.vmem [#allocation4], %s354
          %s357 = ssub.s32 128, 128
          %358 = vsyncadd %s352, %s357
          %s359 = smul.addr %s31, 2
          %s360 = smul.addr %s359, 64
          %s361 = scalar_lea.hbm %s0, %s360
          %s363 = sshll.u32 %s355, 4
          %s364 = int_to_ptr.vmem [resolvable:$true] %s363
          %366 = dma.hbm_to_vmem [thread:$0]  %s361, 128, %s364, %s352
        $region40: #{conv_lstm_cell.1} parent=35 // pred_fallthru
          _
        // Predicated region
        $region41: #{conv_lstm_cell.1} parent=35 // pred_check
          %p367 = pneg %p77
        $region42: #{conv_lstm_cell.1} parent=35 // pred_check_branch
          %369 = sbr.rel (%p367) target = $region44
        $region43: #{conv_lstm_cell.1} parent=35 // pred_region
          %s370 = sand.u32 %s31, 1
          %s371 = scalar_lea.sflag [#allocation8], %s370
          %s372 = sand.u32 %s67, 1
          %s373 = smul.addr %s372, 64
          %s374 = scalar_lea.vmem [#allocation7], %s373
          %s376 = ssub.s32 1024, 1024
          %377 = vsyncadd %s371, %s376
          %s378 = smul.addr %s31, 8
          %s379 = smul.addr %s378, 128
          %s380 = scalar_lea.hbm %s1, %s379
          %s381 = sshll.u32 %s374, 4
          %s382 = int_to_ptr.vmem [resolvable:$true] %s381
          %387 = dma.hbm_to_vmem [thread:$0]  %s380, 1024, %s382, %s371, 256, 256, 16
        $region44: #{conv_lstm_cell.1} parent=35 // pred_fallthru
          _
        // Predicated region
        $region45: #{conv_lstm_cell.1} parent=35 // pred_check
          %p388 = pneg %p103
        $region46: #{conv_lstm_cell.1} parent=35 // pred_check_branch
          %390 = sbr.rel (%p388) target = $region48
        $region47: #{conv_lstm_cell.1} parent=35 // pred_region
          %s391 = sand.u32 %s31, 1
          %s392 = scalar_lea.sflag [#allocation8], %s391
          %s393 = sand.u32 %s93, 1
          %s394 = smul.addr %s393, 64
          %s395 = scalar_lea.vmem [#allocation9], %s394
          %s397 = ssub.s32 1024, 1024
          %398 = vsyncadd %s392, %s397
          %s399 = smul.addr %s31, 8
          %s400 = smul.addr %s399, 128
          %s401 = scalar_lea.hbm %s2, %s400
          %s402 = sshll.u32 %s395, 4
          %s403 = int_to_ptr.vmem [resolvable:$true] %s402
          %408 = dma.hbm_to_vmem [thread:$0]  %s401, 1024, %s403, %s392, 256, 256, 16
        $region48: #{conv_lstm_cell.1} parent=35 // pred_fallthru
          _
      $region36: #{conv_lstm_cell.1} parent=5 // pred_fallthru
        _
      %p409 = scmp.le.s32.totalorder 1, %s31
      %p410 = scmp.lt.s32.totalorder %s31, 3
      %p411 = pnand %p409, %p410
      %p412 = pneg %p411
      // Predicated region
      $region49: #{conv_lstm_cell.1} parent=5 // pred_check
        _
      $region50: #{conv_lstm_cell.1} parent=5 // pred_check_branch
        %414 = sbr.rel (%p411) target = $region52
      $region51: #{conv_lstm_cell.1} parent=5 // pred_region
        %s415 = ssub.s32 %s31, 1
        %s416 = sand.u32 %s44, 1
        %s417 = scalar_lea.sflag [#allocation5], %s416
        %s418 = sand.u32 %s44, 1
        %s419 = smul.addr %s418, 8
        %s420 = scalar_lea.vmem [#allocation4], %s419
        // Predicated region
        $region53: #{conv_lstm_cell.1} parent=51 // pred_check
          %p421 = pneg %p57
        $region54: #{conv_lstm_cell.1} parent=51 // pred_check_branch
          %423 = sbr.rel (%p421) target = $region56
        $region55: #{conv_lstm_cell.1} parent=51 // pred_region
          %424 = dma.done %s417, 128
        $region56: #{conv_lstm_cell.1} parent=51 // pred_fallthru
          _
        %s425 = sand.u32 %s36, 1
        %s426 = scalar_lea.sflag [#allocation8], %s425
        %s427 = sand.u32 %s70, 1
        %s428 = smul.addr %s427, 64
        %s429 = scalar_lea.vmem [#allocation7], %s428
        // Predicated region
        $region57: #{conv_lstm_cell.1} parent=51 // pred_check
          %p430 = pneg %p83
        $region58: #{conv_lstm_cell.1} parent=51 // pred_check_branch
          %432 = sbr.rel (%p430) target = $region60
        $region59: #{conv_lstm_cell.1} parent=51 // pred_region
          %433 = dma.done %s426, 1024
        $region60: #{conv_lstm_cell.1} parent=51 // pred_fallthru
          _
        %s434 = sand.u32 %s36, 1
        %s435 = scalar_lea.sflag [#allocation8], %s434
        %s436 = sand.u32 %s96, 1
        %s437 = smul.addr %s436, 64
        %s438 = scalar_lea.vmem [#allocation9], %s437
        // Predicated region
        $region61: #{conv_lstm_cell.1} parent=51 // pred_check
          %p439 = pneg %p109
        $region62: #{conv_lstm_cell.1} parent=51 // pred_check_branch
          %441 = sbr.rel (%p439) target = $region64
        $region63: #{conv_lstm_cell.1} parent=51 // pred_region
          %442 = dma.done %s435, 1024
        $region64: #{conv_lstm_cell.1} parent=51 // pred_fallthru
          _
        // Predicated region
        $region65: #{conv_lstm_cell.1} parent=51 // pred_check
          %p443 = pneg %p130
        $region66: #{conv_lstm_cell.1} parent=51 // pred_check_branch
          %445 = sbr.rel (%p443) target = $region68
        $region67: #{conv_lstm_cell.1} parent=51 // pred_region
          %446 = dma.done [#allocation11], 3072
        $region68: #{conv_lstm_cell.1} parent=51 // pred_fallthru
          _
        // Predicated region
        $region69: #{conv_lstm_cell.1} parent=51 // pred_check
          %p447 = pneg %p151
        $region70: #{conv_lstm_cell.1} parent=51 // pred_check_branch
          %449 = sbr.rel (%p447) target = $region72
        $region71: #{conv_lstm_cell.1} parent=51 // pred_region
          %450 = dma.done [#allocation11], 64
        $region72: #{conv_lstm_cell.1} parent=51 // pred_fallthru
          _
        // Predicated region
        $region73: #{conv_lstm_cell.1} parent=51 // pred_check
          %p451 = pneg %p172
        $region74: #{conv_lstm_cell.1} parent=51 // pred_check_branch
          %453 = sbr.rel (%p451) target = $region76
        $region75: #{conv_lstm_cell.1} parent=51 // pred_region
          %454 = dma.done [#allocation14], 1024
        $region76: #{conv_lstm_cell.1} parent=51 // pred_fallthru
          _
        // Predicated region
        $region77: #{conv_lstm_cell.1} parent=51 // pred_check
          %p455 = pneg %p193
        $region78: #{conv_lstm_cell.1} parent=51 // pred_check_branch
          %457 = sbr.rel (%p455) target = $region80
        $region79: #{conv_lstm_cell.1} parent=51 // pred_region
          %458 = dma.done [#allocation14], 1024
        $region80: #{conv_lstm_cell.1} parent=51 // pred_fallthru
          _
        // Predicated region
        $region81: #{conv_lstm_cell.1} parent=51 // pred_check
          %p459 = pneg %p214
        $region82: #{conv_lstm_cell.1} parent=51 // pred_check_branch
          %461 = sbr.rel (%p459) target = $region84
        $region83: #{conv_lstm_cell.1} parent=51 // pred_region
          %462 = dma.done [#allocation17], 1024
        $region84: #{conv_lstm_cell.1} parent=51 // pred_fallthru
          _
        %s463 = sand.u32 %s44, 1
        %s464 = scalar_lea.sflag [#allocation5], %s463
        %s465 = sand.u32 %s44, 1
        %s466 = smul.addr %s465, 8
        %s467 = scalar_lea.vmem [#allocation4], %s466
        %p468 = pneg %p57
        %p469 = pneg %p54
        %s470 = sand.u32 %s36, 1
        %s471 = scalar_lea.sflag [#allocation8], %s470
        %s472 = sand.u32 %s70, 1
        %s473 = smul.addr %s472, 64
        %s474 = scalar_lea.vmem [#allocation7], %s473
        %p475 = pneg %p83
        %p476 = pneg %p80
        %s477 = sand.u32 %s36, 1
        %s478 = scalar_lea.sflag [#allocation8], %s477
        %s479 = sand.u32 %s96, 1
        %s480 = smul.addr %s479, 64
        %s481 = scalar_lea.vmem [#allocation9], %s480
        %p482 = pneg %p109
        %p483 = pneg %p106
        %p484 = pneg %p130
        %p485 = pneg %p127
        %p486 = pneg %p151
        %p487 = pneg %p148
        %p488 = pneg %p172
        %p489 = pneg %p169
        %p490 = pneg %p193
        %p491 = pneg %p190
        %p492 = pneg %p214
        %p493 = pneg %p211
        %p494 = pneg %p240
        %p495 = pneg %p237
        %s496 = sand.u32 %s227, 1
        %s497 = scalar_lea.sflag [#allocation6], %s496
        %s498 = sand.u32 %s227, 1
        %s499 = smul.addr %s498, 64
        %s500 = scalar_lea.vmem [#allocation18], %s499
        %p501 = pneg %p266
        %p502 = pneg %p263
        %s503 = sand.u32 %s253, 1
        %s504 = scalar_lea.sflag [#allocation20], %s503
        %s505 = sand.u32 %s253, 1
        %s506 = smul.addr %s505, 64
        %s507 = scalar_lea.vmem [#allocation19], %s506
        %509 = vst [vmem:[#allocation2] sm:$0xff] 0
        %vm510 = vcmask 273408
        %511 = vst.msk [vmem:[#allocation2 + $0x8] sm:$0xf] %vm510, 0
        %512 = vst [vmem:[#allocation2 + $0xc] sm:$0xff] 0
        %513 = vst.msk [vmem:[#allocation2 + $0x14] sm:$0xf] %vm510, 0
        %514 = vst [vmem:[#allocation2 + $0x18] sm:$0xff] 0
        %515 = vst.msk [vmem:[#allocation2 + $0x20] sm:$0xf] %vm510, 0
        %516 = vst [vmem:[#allocation2 + $0x24] sm:$0xff] 0
        %517 = vst.msk [vmem:[#allocation2 + $0x2c] sm:$0xf] %vm510, 0
        %518 = vst [vmem:[#allocation2 + $0x30] sm:$0x33] 0
        %vm519 = vcmask 271360
        %520 = vst.msk [vmem:[#allocation2 + $0x38] sm:$0x3] %vm519, 0
        %v521 = vld [vmem:[%s429] sm:$0xff]
        %v522 = vld [vmem:[%s429 + $0x8] sm:$0xff]
        %v523 = vld [vmem:[%s429 + $0x10] sm:$0xff]
        %v524 = vld [vmem:[%s429 + $0x18] sm:$0xff]
        %v525 = vld [vmem:[%s429 + $0x20] sm:$0xff]
        %v526 = vld [vmem:[%s429 + $0x28] sm:$0xff]
        %v527 = vld [vmem:[%s429 + $0x30] sm:$0xff]
        %v528 = vld [vmem:[%s429 + $0x38] sm:$0xff]
        %v529 = vpack.c.bf16 %v523, %v521
        %v530 = vpack.c.bf16 %v524, %v522
        %v531 = vpack.c.bf16 %v527, %v525
        %v532 = vpack.c.bf16 %v528, %v526
        %v537 = vunpack.c.l.b16 %v529
        %v538 = vunpack.c.l.b16 %v530
        %v539 = vunpack.c.h.b16 %v529
        %v540 = vunpack.c.h.b16 %v530
        %v541 = vunpack.c.l.b16 %v531
        %v542 = vunpack.c.l.b16 %v532
        %v543 = vunpack.c.h.b16 %v531
        %v544 = vunpack.c.h.b16 %v532
        %v545 = vpack.c.b16 %v538, %v537
        %v546 = vpack.c.b16 %v540, %v539
        %v547 = vpack.c.b16 %v542, %v541
        %v548 = vpack.c.b16 %v544, %v543
        %549 = vrot.lane.b32.xlu0 %v545, 17
        %v550 = vpop.permute.xlu0 %549
        %551 = vrot.lane.b32.xlu0 %v546, 17
        %v552 = vpop.permute.xlu0 %551
        %553 = vrot.lane.b32.xlu0 %v547, 17
        %v554 = vpop.permute.xlu0 %553
        %555 = vrot.lane.b32.xlu0 %v548, 17
        %v556 = vpop.permute.xlu0 %555
        %v557 = vrot.slane %v550, 4
        %v558 = vrot.slane %v552, 4
        %v559 = vrot.slane %v554, 4
        %v560 = vrot.slane %v556, 4
        %vm561 = vcmask 138240
        %v562 = vsel %vm561, %v557, %v550
        %v563 = vsel %vm561, %v558, %v552
        %v564 = vsel %vm561, %v559, %v554
        %v565 = vsel %vm561, %v560, %v556
        %vm574 = vcmask 1043592
        %vm575 = vcmask 1047556
        %vm576 = vmor %vm575, %vm574
        %577 = vst.msk [vmem:[#allocation2] sm:$0xff] %vm576, %v562
        %vm578 = vcmask 134144
        %579 = vst.msk [vmem:[#allocation2 + $0x8] sm:$0xf] %vm578, %v557
        %580 = vst.msk [vmem:[#allocation2 + $0xc] sm:$0xff] %vm576, %v563
        %581 = vst.msk [vmem:[#allocation2 + $0x14] sm:$0xf] %vm578, %v558
        %582 = vst.msk [vmem:[#allocation2 + $0x18] sm:$0xff] %vm576, %v564
        %583 = vst.msk [vmem:[#allocation2 + $0x20] sm:$0xf] %vm578, %v559
        %584 = vst.msk [vmem:[#allocation2 + $0x24] sm:$0xff] %vm576, %v565
        %585 = vst.msk [vmem:[#allocation2 + $0x2c] sm:$0xf] %vm578, %v560
        %v586 = vld [vmem:[%s420] sm:$0xff]
        %v588 = vcombine.high %v586, %v586
        %v590 = vpack.c.bf16 %v586, %v586
        %v591 = vpack.c.bf16 %v588, %v588
        %v594 = vunpack.c.l.b16 %v590
        %v595 = vunpack.c.l.b16 %v591
        %v596 = vpack.c.b16 %v595, %v594
        %597 = vrot.lane.b32.xlu0 %v596, 17
        %v598 = vpop.permute.xlu0 %597
        %v599 = vrot.slane %v598, 4
        %v600 = vsel %vm561, %v599, %v598
        %vm603 = vcmask 1041544
        %vm604 = vcmask 1045508
        %vm605 = vmor %vm604, %vm603
        %606 = vst.msk [vmem:[#allocation2 + $0x30] sm:$0x33] %vm605, %v600
        %vm607 = vcmask 132096
        %608 = vst.msk [vmem:[#allocation2 + $0x38] sm:$0x3] %vm607, %v599
        %v609 = vlaneseq
        %v610 = vshrl.u32 %v609, 7
        %v611 = vadd.s32 %v610, 8
        %v612 = vadd.s32 %v610, 16
        %v613 = vadd.s32 %v610, 24
        %v614 = vadd.s32 %v610, 32
        %v615 = vadd.s32 %v610, 40
        %v616 = vadd.s32 %v610, 48
        %v617 = vadd.s32 %v610, 56
        %vm618 = vcmp.eq.s32.totalorder %v610, 0
        %vm619 = vcmp.eq.s32.totalorder %v611, 0
        %vm620 = vcmp.eq.s32.totalorder %v612, 0
        %vm621 = vcmp.eq.s32.totalorder %v613, 0
        %vm622 = vcmp.eq.s32.totalorder %v614, 0
        %vm623 = vcmp.eq.s32.totalorder %v615, 0
        %vm624 = vcmp.eq.s32.totalorder %v616, 0
        %vm625 = vcmp.eq.s32.totalorder %v617, 0
        %v626 = vsel %vm618, 1.0, 0.0
        %v627 = vsel %vm619, 1.0, 0.0
        %v628 = vsel %vm620, 1.0, 0.0
        %v629 = vsel %vm621, 1.0, 0.0
        %v630 = vsel %vm622, 1.0, 0.0
        %v631 = vsel %vm623, 1.0, 0.0
        %v632 = vsel %vm624, 1.0, 0.0
        %v633 = vsel %vm625, 1.0, 0.0
        %v634 = vpack.c.bf16 %v627, %v626
        %v635 = vpack.c.bf16 %v629, %v628
        %v636 = vpack.c.bf16 %v631, %v630
        %v637 = vpack.c.bf16 %v633, %v632
        %vm642 = vcmask 1041408
        %v643 = vrot.slane %v634, 6
        %v644 = vrot.slane %v635, 6
        %v645 = vsel %vm642, %v643, %v644
        %v646 = vrot.slane %v636, 6
        %v647 = vsel %vm642, %v644, %v646
        %v648 = vrot.slane %v637, 6
        %v649 = vsel %vm642, %v646, %v648
        %654 = vst [vmem:[#allocation3 + $0x140] sm:$0xfc] %v643
        %655 = vst [vmem:[#allocation3 + $0x148] sm:$0xfc] %v643
        %656 = vst [vmem:[#allocation3 + $0x150] sm:$0xff] %v645
        %657 = vst [vmem:[#allocation3 + $0x158] sm:$0xff] %v645
        %658 = vst [vmem:[#allocation3 + $0x160] sm:$0xff] %v647
        %659 = vst [vmem:[#allocation3 + $0x168] sm:$0xff] %v647
        %660 = vst [vmem:[#allocation3 + $0x170] sm:$0xff] %v649
        %661 = vst [vmem:[#allocation3 + $0x178] sm:$0xff] %v649
        %v662 = vld [vmem:[#allocation12] sm:$0xf]
        %v663 = vld [vmem:[#allocation2] sm:$0xff]
        %v664 = vld [vmem:[#allocation2 + $0xc] sm:$0xff]
        %v665 = vld [vmem:[#allocation2 + $0x18] sm:$0xff]
        %v666 = vld [vmem:[#allocation2 + $0x24] sm:$0xff]
        %v667 = vld [vmem:[#allocation2 + $0x30] sm:$0x33]
        %v670 = vunpack.c.l.s4 1983009808
        %v671 = vunpack.c.0.s8 %v670
        %v672 = vlaneseq
        %v673 = vshrl.u32 %v672, 7
        %v674 = vsub.s32 %v671, %v673
        %v675 = vrot.slane %v662, %v674
        %v676 = vcombine.high %v675, %v675
        %v678 = vpack.i.b16 %v675, %v675
        %v680 = vlaneseq
        %v681 = vshrl.u32 %v680, 7
        %v682 = vsub.s32 0, %v681
        %v683 = vrot.slane %v678, %v682
        %v685 = vpack.i.b16 %v676, %v676
        %v687 = vlaneseq
        %v688 = vshrl.u32 %v687, 7
        %v689 = vsub.s32 0, %v688
        %v690 = vrot.slane %v685, %v689
        %v693 = vunpack.c.l.b16 %v683
        %v694 = vunpack.c.l.b16 %v690
        %v695 = vpack.c.b16 %v694, %v693
        %v697 = vmul.bf16 %v663, %v695
        %v698 = vmul.bf16 %v664, %v695
        %v699 = vmul.bf16 %v665, %v695
        %v700 = vmul.bf16 %v666, %v695
        %v701 = vmul.bf16 %v667, %v695
        %v707 = vunpack.c.l.b16 %v697
        %v708 = vunpack.c.h.b16 %v697
        %v709 = vunpack.c.l.b16 %v698
        %v710 = vunpack.c.h.b16 %v698
        %v711 = vunpack.c.l.b16 %v699
        %v712 = vunpack.c.h.b16 %v699
        %v713 = vunpack.c.l.b16 %v700
        %v714 = vunpack.c.h.b16 %v700
        %v715 = vunpack.c.l.b16 %v701
        %v716 = vunpack.c.h.b16 %v701
        %v717 = vpack.c.b16 %v709, %v707
        %v718 = vpack.c.b16 %v710, %v708
        %v719 = vpack.c.b16 %v713, %v711
        %v720 = vpack.c.b16 %v714, %v712
        %v721 = vpack.c.b16 %v715, %v715
        %v722 = vpack.c.b16 %v716, %v716
        %729 = vst [vmem:[#allocation3] sm:$0xff] %v717
        %730 = vst [vmem:[#allocation3 + $0x8] sm:$0xff] %v718
        %731 = vst [vmem:[#allocation3 + $0x10] sm:$0xff] %v719
        %732 = vst [vmem:[#allocation3 + $0x18] sm:$0xff] %v720
        %733 = vst [vmem:[#allocation3 + $0x20] sm:$0x3] %v721
        %734 = vst [vmem:[#allocation3 + $0x28] sm:$0x3] %v722
        %v735 = vld [vmem:[#allocation2] sm:$0xff]
        %v736 = vld [vmem:[#allocation2 + $0x8] sm:$0xf]
        %v737 = vld [vmem:[#allocation2 + $0xc] sm:$0xff]
        %v738 = vld [vmem:[#allocation2 + $0x14] sm:$0xf]
        %v739 = vld [vmem:[#allocation2 + $0x18] sm:$0xff]
        %v740 = vld [vmem:[#allocation2 + $0x20] sm:$0xf]
        %v741 = vld [vmem:[#allocation2 + $0x24] sm:$0xff]
        %v742 = vld [vmem:[#allocation2 + $0x2c] sm:$0xf]
        %v743 = vld [vmem:[#allocation2 + $0x30] sm:$0x33]
        %v744 = vld [vmem:[#allocation2 + $0x38] sm:$0x3]
        %745 = vrot.lane.b32.xlu0 %v695, 16
        %v746 = vpop.permute.xlu0 %745
        %v747 = vrot.slane %v746, 4
        %vm748 = vcmask 130048
        %v749 = vsel %vm748, %v747, %v746
        %v752 = vmul.bf16 %v735, %v749
        %v753 = vmul.bf16 %v736, %v747
        %v754 = vmul.bf16 %v737, %v749
        %v755 = vmul.bf16 %v738, %v747
        %v756 = vmul.bf16 %v739, %v749
        %v757 = vmul.bf16 %v740, %v747
        %v758 = vmul.bf16 %v741, %v749
        %v759 = vmul.bf16 %v742, %v747
        %v760 = vmul.bf16 %v743, %v749
        %v761 = vmul.bf16 %v744, %v747
        %v772 = vunpack.c.l.b16 %v752
        %v773 = vunpack.c.h.b16 %v752
        %v774 = vunpack.c.l.b16 %v753
        %v775 = vunpack.c.l.b16 %v754
        %v776 = vunpack.c.h.b16 %v754
        %v777 = vunpack.c.l.b16 %v755
        %v778 = vunpack.c.l.b16 %v756
        %v779 = vunpack.c.h.b16 %v756
        %v780 = vunpack.c.l.b16 %v757
        %v781 = vunpack.c.l.b16 %v758
        %v782 = vunpack.c.h.b16 %v758
        %v783 = vunpack.c.l.b16 %v759
        %v784 = vunpack.c.l.b16 %v760
        %v785 = vunpack.c.h.b16 %v760
        %v786 = vunpack.c.l.b16 %v761
        %v787 = vpack.c.b16 %v775, %v772
        %v788 = vpack.c.b16 %v776, %v773
        %v789 = vpack.c.b16 %v777, %v774
        %v790 = vpack.c.b16 %v781, %v778
        %v791 = vpack.c.b16 %v782, %v779
        %v792 = vpack.c.b16 %v783, %v780
        %v793 = vpack.c.b16 %v784, %v784
        %v794 = vpack.c.b16 %v785, %v785
        %v795 = vpack.c.b16 %v786, %v786
        %vm796 = vcmask 1045504
        %v797 = vrot.slane %v787, 2
        %v798 = vrot.slane %v788, 2
        %v799 = vrot.slane %v789, 2
        %v800 = vrot.slane %v790, 2
        %v801 = vsel %vm796, %v797, %v800
        %v802 = vrot.slane %v791, 2
        %v803 = vsel %vm796, %v798, %v802
        %v804 = vrot.slane %v792, 2
        %v805 = vsel %vm796, %v799, %v804
        %v806 = vrot.slane %v793, 2
        %v807 = vsel %vm796, %v800, %v806
        %v808 = vrot.slane %v794, 2
        %v809 = vsel %vm796, %v802, %v808
        %v810 = vrot.slane %v795, 2
        %v811 = vsel %vm796, %v804, %v810
        %812 = vrot.lane.b32.xlu0 %v797, 112
        %v813 = vpop.permute.xlu0 %812
        %814 = vrot.lane.b32.xlu0 %v798, 112
        %v815 = vpop.permute.xlu0 %814
        %816 = vrot.lane.b32.xlu0 %v799, 112
        %v817 = vpop.permute.xlu0 %816
        %818 = vrot.lane.b32.xlu0 %v801, 112
        %v819 = vpop.permute.xlu0 %818
        %820 = vrot.lane.b32.xlu0 %v803, 112
        %v821 = vpop.permute.xlu0 %820
        %822 = vrot.lane.b32.xlu0 %v805, 112
        %v823 = vpop.permute.xlu0 %822
        %824 = vrot.lane.b32.xlu0 %v807, 112
        %v825 = vpop.permute.xlu0 %824
        %826 = vrot.lane.b32.xlu0 %v809, 112
        %v827 = vpop.permute.xlu0 %826
        %828 = vrot.lane.b32.xlu0 %v811, 112
        %v829 = vpop.permute.xlu0 %828
        %vm830 = vcmask 916480
        %v831 = vsel %vm830, %v813, %v815
        %v832 = vsel %vm830, %v815, %v817
        %v833 = vsel %vm830, %v819, %v821
        %v834 = vsel %vm830, %v821, %v823
        %v835 = vsel %vm830, %v825, %v827
        %v836 = vsel %vm830, %v827, %v829
        %843 = vst [vmem:[#allocation3 + $0x60] sm:$0xc0] %v831
        %844 = vst [vmem:[#allocation3 + $0x68] sm:$0xc0] %v832
        %845 = vst [vmem:[#allocation3 + $0x70] sm:$0xff] %v833
        %846 = vst [vmem:[#allocation3 + $0x78] sm:$0xff] %v834
        %847 = vst [vmem:[#allocation3 + $0x80] sm:$0xff] %v835
        %848 = vst [vmem:[#allocation3 + $0x88] sm:$0xff] %v836
        %v849 = vld [vmem:[#allocation2] sm:$0xff]
        %v850 = vld [vmem:[#allocation2 + $0x8] sm:$0xf]
        %v851 = vld [vmem:[#allocation2 + $0xc] sm:$0xff]
        %v852 = vld [vmem:[#allocation2 + $0x14] sm:$0xf]
        %v853 = vld [vmem:[#allocation2 + $0x18] sm:$0xff]
        %v854 = vld [vmem:[#allocation2 + $0x20] sm:$0xf]
        %v855 = vld [vmem:[#allocation2 + $0x24] sm:$0xff]
        %v856 = vld [vmem:[#allocation2 + $0x2c] sm:$0xf]
        %v857 = vld [vmem:[#allocation2 + $0x30] sm:$0x33]
        %v858 = vld [vmem:[#allocation2 + $0x38] sm:$0x3]
        %859 = vrot.lane.b32.xlu0 %v695, 32
        %v860 = vpop.permute.xlu0 %859
        %v861 = vrot.slane %v860, 4
        %vm862 = vcmask 261120
        %v863 = vsel %vm862, %v861, %v860
        %v866 = vmul.bf16 %v849, %v863
        %v867 = vmul.bf16 %v850, %v861
        %v868 = vmul.bf16 %v851, %v863
        %v869 = vmul.bf16 %v852, %v861
        %v870 = vmul.bf16 %v853, %v863
        %v871 = vmul.bf16 %v854, %v861
        %v872 = vmul.bf16 %v855, %v863
        %v873 = vmul.bf16 %v856, %v861
        %v874 = vmul.bf16 %v857, %v863
        %v875 = vmul.bf16 %v858, %v861
        %v886 = vunpack.c.l.b16 %v866
        %v887 = vunpack.c.h.b16 %v866
        %v888 = vunpack.c.l.b16 %v867
        %v889 = vunpack.c.l.b16 %v868
        %v890 = vunpack.c.h.b16 %v868
        %v891 = vunpack.c.l.b16 %v869
        %v892 = vunpack.c.l.b16 %v870
        %v893 = vunpack.c.h.b16 %v870
        %v894 = vunpack.c.l.b16 %v871
        %v895 = vunpack.c.l.b16 %v872
        %v896 = vunpack.c.h.b16 %v872
        %v897 = vunpack.c.l.b16 %v873
        %v898 = vunpack.c.l.b16 %v874
        %v899 = vunpack.c.h.b16 %v874
        %v900 = vunpack.c.l.b16 %v875
        %v901 = vpack.c.b16 %v886, %v886
        %v902 = vpack.c.b16 %v887, %v887
        %v903 = vpack.c.b16 %v888, %v888
        %v904 = vpack.c.b16 %v892, %v889
        %v905 = vpack.c.b16 %v893, %v890
        %v906 = vpack.c.b16 %v894, %v891
        %v907 = vpack.c.b16 %v898, %v895
        %v908 = vpack.c.b16 %v899, %v896
        %v909 = vpack.c.b16 %v900, %v897
        %910 = vrot.lane.b32.xlu0 %v901, 96
        %v911 = vpop.permute.xlu0 %910
        %912 = vrot.lane.b32.xlu0 %v902, 96
        %v913 = vpop.permute.xlu0 %912
        %914 = vrot.lane.b32.xlu0 %v903, 96
        %v915 = vpop.permute.xlu0 %914
        %916 = vrot.lane.b32.xlu0 %v904, 96
        %v917 = vpop.permute.xlu0 %916
        %918 = vrot.lane.b32.xlu0 %v905, 96
        %v919 = vpop.permute.xlu0 %918
        %920 = vrot.lane.b32.xlu0 %v906, 96
        %v921 = vpop.permute.xlu0 %920
        %922 = vrot.lane.b32.xlu0 %v907, 96
        %v923 = vpop.permute.xlu0 %922
        %924 = vrot.lane.b32.xlu0 %v908, 96
        %v925 = vpop.permute.xlu0 %924
        %926 = vrot.lane.b32.xlu0 %v909, 96
        %v927 = vpop.permute.xlu0 %926
        %vm928 = vcmask 785408
        %v929 = vsel %vm928, %v911, %v913
        %v930 = vsel %vm928, %v913, %v915
        %v931 = vsel %vm928, %v917, %v919
        %v932 = vsel %vm928, %v919, %v921
        %v933 = vsel %vm928, %v923, %v925
        %v934 = vsel %vm928, %v925, %v927
        %941 = vst [vmem:[#allocation3 + $0xd0] sm:$0xf0] %v929
        %942 = vst [vmem:[#allocation3 + $0xd8] sm:$0xf0] %v930
        %943 = vst [vmem:[#allocation3 + $0xe0] sm:$0xff] %v931
        %944 = vst [vmem:[#allocation3 + $0xe8] sm:$0xff] %v932
        %945 = vst [vmem:[#allocation3 + $0xf0] sm:$0x3f] %v933
        %946 = vst [vmem:[#allocation3 + $0xf8] sm:$0x3f] %v934
        %v947 = vld [vmem:[#allocation2] sm:$0xff]
        %v948 = vld [vmem:[#allocation2 + $0x8] sm:$0xf]
        %v949 = vld [vmem:[#allocation2 + $0xc] sm:$0xff]
        %v950 = vld [vmem:[#allocation2 + $0x14] sm:$0xf]
        %v951 = vld [vmem:[#allocation2 + $0x18] sm:$0xff]
        %v952 = vld [vmem:[#allocation2 + $0x20] sm:$0xf]
        %v953 = vld [vmem:[#allocation2 + $0x24] sm:$0xff]
        %v954 = vld [vmem:[#allocation2 + $0x2c] sm:$0xf]
        %v955 = vld [vmem:[#allocation2 + $0x30] sm:$0x33]
        %v956 = vld [vmem:[#allocation2 + $0x38] sm:$0x3]
        %v957 = vshrl.u32 %v675, 16
        %v958 = vpack.i.b16 %v957, %v957
        %v960 = vlaneseq
        %v961 = vshrl.u32 %v960, 7
        %v962 = vsub.s32 0, %v961
        %v963 = vrot.slane %v958, %v962
        %v964 = vshrl.u32 %v676, 16
        %v965 = vpack.i.b16 %v964, %v964
        %v967 = vlaneseq
        %v968 = vshrl.u32 %v967, 7
        %v969 = vsub.s32 0, %v968
        %v970 = vrot.slane %v965, %v969
        %v973 = vunpack.c.l.b16 %v963
        %v974 = vunpack.c.l.b16 %v970
        %v975 = vpack.c.b16 %v974, %v973
        %976 = vrot.lane.b32.xlu0 %v975, 1
        %v977 = vpop.permute.xlu0 %976
        %v978 = vrot.slane %v977, 4
        %vm979 = vcmask 7168
        %v980 = vsel %vm979, %v978, %v977
        %v983 = vmul.bf16 %v947, %v980
        %v984 = vmul.bf16 %v948, %v978
        %v985 = vmul.bf16 %v949, %v980
        %v986 = vmul.bf16 %v950, %v978
        %v987 = vmul.bf16 %v951, %v980
        %v988 = vmul.bf16 %v952, %v978
        %v989 = vmul.bf16 %v953, %v980
        %v990 = vmul.bf16 %v954, %v978
        %v991 = vmul.bf16 %v955, %v980
        %v992 = vmul.bf16 %v956, %v978
        %v1003 = vunpack.c.l.b16 %v983
        %v1004 = vunpack.c.h.b16 %v983
        %v1005 = vunpack.c.l.b16 %v984
        %v1006 = vunpack.c.l.b16 %v985
        %v1007 = vunpack.c.h.b16 %v985
        %v1008 = vunpack.c.l.b16 %v986
        %v1009 = vunpack.c.l.b16 %v987
        %v1010 = vunpack.c.h.b16 %v987
        %v1011 = vunpack.c.l.b16 %v988
        %v1012 = vunpack.c.l.b16 %v989
        %v1013 = vunpack.c.h.b16 %v989
        %v1014 = vunpack.c.l.b16 %v990
        %v1015 = vunpack.c.l.b16 %v991
        %v1016 = vunpack.c.h.b16 %v991
        %v1017 = vunpack.c.l.b16 %v992
        %v1018 = vpack.c.b16 %v1006, %v1003
        %v1019 = vpack.c.b16 %v1007, %v1004
        %v1020 = vpack.c.b16 %v1008, %v1005
        %v1021 = vpack.c.b16 %v1012, %v1009
        %v1022 = vpack.c.b16 %v1013, %v1010
        %v1023 = vpack.c.b16 %v1014, %v1011
        %v1024 = vpack.c.b16 %v1015, %v1015
        %v1025 = vpack.c.b16 %v1016, %v1016
        %v1026 = vpack.c.b16 %v1017, %v1017
        %v1027 = vrot.slane %v1018, 6
        %v1028 = vrot.slane %v1019, 6
        %v1029 = vrot.slane %v1020, 6
        %v1030 = vrot.slane %v1021, 6
        %v1031 = vsel %vm642, %v1027, %v1030
        %v1032 = vrot.slane %v1022, 6
        %v1033 = vsel %vm642, %v1028, %v1032
        %v1034 = vrot.slane %v1023, 6
        %v1035 = vsel %vm642, %v1029, %v1034
        %v1036 = vrot.slane %v1024, 6
        %v1037 = vsel %vm642, %v1030, %v1036
        %v1038 = vrot.slane %v1025, 6
        %v1039 = vsel %vm642, %v1032, %v1038
        %v1040 = vrot.slane %v1026, 6
        %v1041 = vsel %vm642, %v1034, %v1040
        %1042 = vrot.lane.b32.xlu0 %v1027, 127
        %v1043 = vpop.permute.xlu0 %1042
        %1044 = vrot.lane.b32.xlu0 %v1028, 127
        %v1045 = vpop.permute.xlu0 %1044
        %1046 = vrot.lane.b32.xlu0 %v1029, 127
        %v1047 = vpop.permute.xlu0 %1046
        %1048 = vrot.lane.b32.xlu0 %v1031, 127
        %v1049 = vpop.permute.xlu0 %1048
        %1050 = vrot.lane.b32.xlu0 %v1033, 127
        %v1051 = vpop.permute.xlu0 %1050
        %1052 = vrot.lane.b32.xlu0 %v1035, 127
        %v1053 = vpop.permute.xlu0 %1052
        %1054 = vrot.lane.b32.xlu0 %v1037, 127
        %v1055 = vpop.permute.xlu0 %1054
        %1056 = vrot.lane.b32.xlu0 %v1039, 127
        %v1057 = vpop.permute.xlu0 %1056
        %1058 = vrot.lane.b32.xlu0 %v1041, 127
        %v1059 = vpop.permute.xlu0 %1058
        %vm1060 = vcmask 1039360
        %v1061 = vsel %vm1060, %v1043, %v1045
        %v1062 = vsel %vm1060, %v1045, %v1047
        %v1063 = vsel %vm1060, %v1049, %v1051
        %v1064 = vsel %vm1060, %v1051, %v1053
        %v1065 = vsel %vm1060, %v1055, %v1057
        %v1066 = vsel %vm1060, %v1057, %v1059
        %1073 = vst [vmem:[#allocation3 + $0x20] sm:$0xfc] %v1061
        %1074 = vst [vmem:[#allocation3 + $0x28] sm:$0xfc] %v1062
        %1075 = vst [vmem:[#allocation3 + $0x30] sm:$0xff] %v1063
        %1076 = vst [vmem:[#allocation3 + $0x38] sm:$0xff] %v1064
        %1077 = vst [vmem:[#allocation3 + $0x40] sm:$0xf] %v1065
        %1078 = vst [vmem:[#allocation3 + $0x48] sm:$0xf] %v1066
        %v1079 = vld [vmem:[#allocation2] sm:$0xff]
        %v1080 = vld [vmem:[#allocation2 + $0x8] sm:$0xf]
        %v1081 = vld [vmem:[#allocation2 + $0xc] sm:$0xff]
        %v1082 = vld [vmem:[#allocation2 + $0x14] sm:$0xf]
        %v1083 = vld [vmem:[#allocation2 + $0x18] sm:$0xff]
        %v1084 = vld [vmem:[#allocation2 + $0x20] sm:$0xf]
        %v1085 = vld [vmem:[#allocation2 + $0x24] sm:$0xff]
        %v1086 = vld [vmem:[#allocation2 + $0x2c] sm:$0xf]
        %v1087 = vld [vmem:[#allocation2 + $0x30] sm:$0x33]
        %v1088 = vld [vmem:[#allocation2 + $0x38] sm:$0x3]
        %1089 = vrot.lane.b32.xlu0 %v975, 17
        %v1090 = vpop.permute.xlu0 %1089
        %v1091 = vrot.slane %v1090, 4
        %v1092 = vsel %vm561, %v1091, %v1090
        %v1095 = vmul.bf16 %v1079, %v1092
        %v1096 = vmul.bf16 %v1080, %v1091
        %v1097 = vmul.bf16 %v1081, %v1092
        %v1098 = vmul.bf16 %v1082, %v1091
        %v1099 = vmul.bf16 %v1083, %v1092
        %v1100 = vmul.bf16 %v1084, %v1091
        %v1101 = vmul.bf16 %v1085, %v1092
        %v1102 = vmul.bf16 %v1086, %v1091
        %v1103 = vmul.bf16 %v1087, %v1092
        %v1104 = vmul.bf16 %v1088, %v1091
        %v1115 = vunpack.c.l.b16 %v1095
        %v1116 = vunpack.c.h.b16 %v1095
        %v1117 = vunpack.c.l.b16 %v1096
        %v1118 = vunpack.c.l.b16 %v1097
        %v1119 = vunpack.c.h.b16 %v1097
        %v1120 = vunpack.c.l.b16 %v1098
        %v1121 = vunpack.c.l.b16 %v1099
        %v1122 = vunpack.c.h.b16 %v1099
        %v1123 = vunpack.c.l.b16 %v1100
        %v1124 = vunpack.c.l.b16 %v1101
        %v1125 = vunpack.c.h.b16 %v1101
        %v1126 = vunpack.c.l.b16 %v1102
        %v1127 = vunpack.c.l.b16 %v1103
        %v1128 = vunpack.c.h.b16 %v1103
        %v1129 = vunpack.c.l.b16 %v1104
        %v1130 = vpack.c.b16 %v1118, %v1115
        %v1131 = vpack.c.b16 %v1119, %v1116
        %v1132 = vpack.c.b16 %v1120, %v1117
        %v1133 = vpack.c.b16 %v1124, %v1121
        %v1134 = vpack.c.b16 %v1125, %v1122
        %v1135 = vpack.c.b16 %v1126, %v1123
        %v1136 = vpack.c.b16 %v1127, %v1127
        %v1137 = vpack.c.b16 %v1128, %v1128
        %v1138 = vpack.c.b16 %v1129, %v1129
        %1139 = vrot.lane.b32.xlu0 %v1130, 111
        %v1140 = vpop.permute.xlu0 %1139
        %1141 = vrot.lane.b32.xlu0 %v1131, 111
        %v1142 = vpop.permute.xlu0 %1141
        %1143 = vrot.lane.b32.xlu0 %v1132, 111
        %v1144 = vpop.permute.xlu0 %1143
        %1145 = vrot.lane.b32.xlu0 %v1133, 111
        %v1146 = vpop.permute.xlu0 %1145
        %1147 = vrot.lane.b32.xlu0 %v1134, 111
        %v1148 = vpop.permute.xlu0 %1147
        %1149 = vrot.lane.b32.xlu0 %v1135, 111
        %v1150 = vpop.permute.xlu0 %1149
        %1151 = vrot.lane.b32.xlu0 %v1136, 111
        %v1152 = vpop.permute.xlu0 %1151
        %1153 = vrot.lane.b32.xlu0 %v1137, 111
        %v1154 = vpop.permute.xlu0 %1153
        %1155 = vrot.lane.b32.xlu0 %v1138, 111
        %v1156 = vpop.permute.xlu0 %1155
        %vm1157 = vcmask 908288
        %v1158 = vsel %vm1157, %v1140, %v1142
        %v1159 = vsel %vm1157, %v1142, %v1144
        %v1160 = vsel %vm1157, %v1146, %v1148
        %v1161 = vsel %vm1157, %v1148, %v1150
        %v1162 = vsel %vm1157, %v1152, %v1154
        %v1163 = vsel %vm1157, %v1154, %v1156
        %1170 = vst [vmem:[#allocation3 + $0x90] sm:$0xff] %v1158
        %1171 = vst [vmem:[#allocation3 + $0x98] sm:$0xff] %v1159
        %1172 = vst [vmem:[#allocation3 + $0xa0] sm:$0xff] %v1160
        %1173 = vst [vmem:[#allocation3 + $0xa8] sm:$0xff] %v1161
        %1174 = vst [vmem:[#allocation3 + $0xb0] sm:$0x3] %v1162
        %1175 = vst [vmem:[#allocation3 + $0xb8] sm:$0x3] %v1163
        %v1176 = vld [vmem:[#allocation2] sm:$0xff]
        %v1177 = vld [vmem:[#allocation2 + $0x8] sm:$0xf]
        %v1178 = vld [vmem:[#allocation2 + $0xc] sm:$0xff]
        %v1179 = vld [vmem:[#allocation2 + $0x14] sm:$0xf]
        %v1180 = vld [vmem:[#allocation2 + $0x18] sm:$0xff]
        %v1181 = vld [vmem:[#allocation2 + $0x20] sm:$0xf]
        %v1182 = vld [vmem:[#allocation2 + $0x24] sm:$0xff]
        %v1183 = vld [vmem:[#allocation2 + $0x2c] sm:$0xf]
        %v1184 = vld [vmem:[#allocation2 + $0x30] sm:$0x33]
        %v1185 = vld [vmem:[#allocation2 + $0x38] sm:$0x3]
        %1186 = vrot.lane.b32.xlu0 %v975, 33
        %v1187 = vpop.permute.xlu0 %1186
        %v1188 = vrot.slane %v1187, 4
        %vm1189 = vcmask 269312
        %v1190 = vsel %vm1189, %v1188, %v1187
        %v1193 = vmul.bf16 %v1176, %v1190
        %v1194 = vmul.bf16 %v1177, %v1188
        %v1195 = vmul.bf16 %v1178, %v1190
        %v1196 = vmul.bf16 %v1179, %v1188
        %v1197 = vmul.bf16 %v1180, %v1190
        %v1198 = vmul.bf16 %v1181, %v1188
        %v1199 = vmul.bf16 %v1182, %v1190
        %v1200 = vmul.bf16 %v1183, %v1188
        %v1201 = vmul.bf16 %v1184, %v1190
        %v1202 = vmul.bf16 %v1185, %v1188
        %v1213 = vunpack.c.l.b16 %v1193
        %v1214 = vunpack.c.h.b16 %v1193
        %v1215 = vunpack.c.l.b16 %v1194
        %v1216 = vunpack.c.l.b16 %v1195
        %v1217 = vunpack.c.h.b16 %v1195
        %v1218 = vunpack.c.l.b16 %v1196
        %v1219 = vunpack.c.l.b16 %v1197
        %v1220 = vunpack.c.h.b16 %v1197
        %v1221 = vunpack.c.l.b16 %v1198
        %v1222 = vunpack.c.l.b16 %v1199
        %v1223 = vunpack.c.h.b16 %v1199
        %v1224 = vunpack.c.l.b16 %v1200
        %v1225 = vunpack.c.l.b16 %v1201
        %v1226 = vunpack.c.h.b16 %v1201
        %v1227 = vunpack.c.l.b16 %v1202
        %v1228 = vpack.c.b16 %v1216, %v1213
        %v1229 = vpack.c.b16 %v1217, %v1214
        %v1230 = vpack.c.b16 %v1218, %v1215
        %v1231 = vpack.c.b16 %v1222, %v1219
        %v1232 = vpack.c.b16 %v1223, %v1220
        %v1233 = vpack.c.b16 %v1224, %v1221
        %v1234 = vpack.c.b16 %v1225, %v1225
        %v1235 = vpack.c.b16 %v1226, %v1226
        %v1236 = vpack.c.b16 %v1227, %v1227
        %v1237 = vrot.slane %v1228, 2
        %v1238 = vrot.slane %v1229, 2
        %v1239 = vrot.slane %v1230, 2
        %v1240 = vrot.slane %v1231, 2
        %v1241 = vsel %vm796, %v1237, %v1240
        %v1242 = vrot.slane %v1232, 2
        %v1243 = vsel %vm796, %v1238, %v1242
        %v1244 = vrot.slane %v1233, 2
        %v1245 = vsel %vm796, %v1239, %v1244
        %v1246 = vrot.slane %v1234, 2
        %v1247 = vsel %vm796, %v1240, %v1246
        %v1248 = vrot.slane %v1235, 2
        %v1249 = vsel %vm796, %v1242, %v1248
        %v1250 = vrot.slane %v1236, 2
        %v1251 = vsel %vm796, %v1244, %v1250
        %1252 = vrot.lane.b32.xlu0 %v1237, 95
        %v1253 = vpop.permute.xlu0 %1252
        %1254 = vrot.lane.b32.xlu0 %v1238, 95
        %v1255 = vpop.permute.xlu0 %1254
        %1256 = vrot.lane.b32.xlu0 %v1239, 95
        %v1257 = vpop.permute.xlu0 %1256
        %1258 = vrot.lane.b32.xlu0 %v1241, 95
        %v1259 = vpop.permute.xlu0 %1258
        %1260 = vrot.lane.b32.xlu0 %v1243, 95
        %v1261 = vpop.permute.xlu0 %1260
        %1262 = vrot.lane.b32.xlu0 %v1245, 95
        %v1263 = vpop.permute.xlu0 %1262
        %1264 = vrot.lane.b32.xlu0 %v1247, 95
        %v1265 = vpop.permute.xlu0 %1264
        %1266 = vrot.lane.b32.xlu0 %v1249, 95
        %v1267 = vpop.permute.xlu0 %1266
        %1268 = vrot.lane.b32.xlu0 %v1251, 95
        %v1269 = vpop.permute.xlu0 %1268
        %vm1270 = vcmask 777216
        %v1271 = vsel %vm1270, %v1253, %v1255
        %v1272 = vsel %vm1270, %v1255, %v1257
        %v1273 = vsel %vm1270, %v1259, %v1261
        %v1274 = vsel %vm1270, %v1261, %v1263
        %v1275 = vsel %vm1270, %v1265, %v1267
        %v1276 = vsel %vm1270, %v1267, %v1269
        %1283 = vst [vmem:[#allocation3 + $0xf0] sm:$0xc0] %v1271
        %1284 = vst [vmem:[#allocation3 + $0xf8] sm:$0xc0] %v1272
        %1285 = vst [vmem:[#allocation3 + $0x100] sm:$0xff] %v1273
        %1286 = vst [vmem:[#allocation3 + $0x108] sm:$0xff] %v1274
        %1287 = vst [vmem:[#allocation3 + $0x110] sm:$0xff] %v1275
        %1288 = vst [vmem:[#allocation3 + $0x118] sm:$0xff] %v1276
        %v1289 = vld [vmem:[#allocation2] sm:$0xff]
        %v1290 = vld [vmem:[#allocation2 + $0x8] sm:$0xf]
        %v1291 = vld [vmem:[#allocation2 + $0xc] sm:$0xff]
        %v1292 = vld [vmem:[#allocation2 + $0x14] sm:$0xf]
        %v1293 = vld [vmem:[#allocation2 + $0x18] sm:$0xff]
        %v1294 = vld [vmem:[#allocation2 + $0x20] sm:$0xf]
        %v1295 = vld [vmem:[#allocation2 + $0x24] sm:$0xff]
        %v1296 = vld [vmem:[#allocation2 + $0x2c] sm:$0xf]
        %v1297 = vld [vmem:[#allocation2 + $0x30] sm:$0x33]
        %v1298 = vld [vmem:[#allocation2 + $0x38] sm:$0x3]
        %v1299 = vlaneseq
        %v1300 = vshrl.u32 %v1299, 7
        %v1301 = vsub.s32 1, %v1300
        %v1302 = vrot.slane %v678, %v1301
        %v1303 = vlaneseq
        %v1304 = vshrl.u32 %v1303, 7
        %v1305 = vsub.s32 1, %v1304
        %v1306 = vrot.slane %v685, %v1305
        %v1309 = vunpack.c.l.b16 %v1302
        %v1310 = vunpack.c.l.b16 %v1306
        %v1311 = vpack.c.b16 %v1310, %v1309
        %1312 = vrot.lane.b32.xlu0 %v1311, 2
        %v1313 = vpop.permute.xlu0 %1312
        %v1314 = vrot.slane %v1313, 4
        %vm1315 = vcmask 15360
        %v1316 = vsel %vm1315, %v1314, %v1313
        %v1319 = vmul.bf16 %v1289, %v1316
        %v1320 = vmul.bf16 %v1290, %v1314
        %v1321 = vmul.bf16 %v1291, %v1316
        %v1322 = vmul.bf16 %v1292, %v1314
        %v1323 = vmul.bf16 %v1293, %v1316
        %v1324 = vmul.bf16 %v1294, %v1314
        %v1325 = vmul.bf16 %v1295, %v1316
        %v1326 = vmul.bf16 %v1296, %v1314
        %v1327 = vmul.bf16 %v1297, %v1316
        %v1328 = vmul.bf16 %v1298, %v1314
        %v1339 = vunpack.c.l.b16 %v1319
        %v1340 = vunpack.c.h.b16 %v1319
        %v1341 = vunpack.c.l.b16 %v1320
        %v1342 = vunpack.c.l.b16 %v1321
        %v1343 = vunpack.c.h.b16 %v1321
        %v1344 = vunpack.c.l.b16 %v1322
        %v1345 = vunpack.c.l.b16 %v1323
        %v1346 = vunpack.c.h.b16 %v1323
        %v1347 = vunpack.c.l.b16 %v1324
        %v1348 = vunpack.c.l.b16 %v1325
        %v1349 = vunpack.c.h.b16 %v1325
        %v1350 = vunpack.c.l.b16 %v1326
        %v1351 = vunpack.c.l.b16 %v1327
        %v1352 = vunpack.c.h.b16 %v1327
        %v1353 = vunpack.c.l.b16 %v1328
        %v1354 = vpack.c.b16 %v1339, %v1339
        %v1355 = vpack.c.b16 %v1340, %v1340
        %v1356 = vpack.c.b16 %v1341, %v1341
        %v1357 = vpack.c.b16 %v1345, %v1342
        %v1358 = vpack.c.b16 %v1346, %v1343
        %v1359 = vpack.c.b16 %v1347, %v1344
        %v1360 = vpack.c.b16 %v1351, %v1348
        %v1361 = vpack.c.b16 %v1352, %v1349
        %v1362 = vpack.c.b16 %v1353, %v1350
        %1363 = vrot.lane.b32.xlu0 %v1354, 126
        %v1364 = vpop.permute.xlu0 %1363
        %1365 = vrot.lane.b32.xlu0 %v1355, 126
        %v1366 = vpop.permute.xlu0 %1365
        %1367 = vrot.lane.b32.xlu0 %v1356, 126
        %v1368 = vpop.permute.xlu0 %1367
        %1369 = vrot.lane.b32.xlu0 %v1357, 126
        %v1370 = vpop.permute.xlu0 %1369
        %1371 = vrot.lane.b32.xlu0 %v1358, 126
        %v1372 = vpop.permute.xlu0 %1371
        %1373 = vrot.lane.b32.xlu0 %v1359, 126
        %v1374 = vpop.permute.xlu0 %1373
        %1375 = vrot.lane.b32.xlu0 %v1360, 126
        %v1376 = vpop.permute.xlu0 %1375
        %1377 = vrot.lane.b32.xlu0 %v1361, 126
        %v1378 = vpop.permute.xlu0 %1377
        %1379 = vrot.lane.b32.xlu0 %v1362, 126
        %v1380 = vpop.permute.xlu0 %1379
        %vm1381 = vcmask 1031168
        %v1382 = vsel %vm1381, %v1364, %v1366
        %v1383 = vsel %vm1381, %v1366, %v1368
        %v1384 = vsel %vm1381, %v1370, %v1372
        %v1385 = vsel %vm1381, %v1372, %v1374
        %v1386 = vsel %vm1381, %v1376, %v1378
        %v1387 = vsel %vm1381, %v1378, %v1380
        %1394 = vst [vmem:[#allocation3 + $0x40] sm:$0xf0] %v1382
        %1395 = vst [vmem:[#allocation3 + $0x48] sm:$0xf0] %v1383
        %1396 = vst [vmem:[#allocation3 + $0x50] sm:$0xff] %v1384
        %1397 = vst [vmem:[#allocation3 + $0x58] sm:$0xff] %v1385
        %1398 = vst [vmem:[#allocation3 + $0x60] sm:$0x3f] %v1386
        %1399 = vst [vmem:[#allocation3 + $0x68] sm:$0x3f] %v1387
        %v1400 = vld [vmem:[#allocation2] sm:$0xff]
        %v1401 = vld [vmem:[#allocation2 + $0x8] sm:$0xf]
        %v1402 = vld [vmem:[#allocation2 + $0xc] sm:$0xff]
        %v1403 = vld [vmem:[#allocation2 + $0x14] sm:$0xf]
        %v1404 = vld [vmem:[#allocation2 + $0x18] sm:$0xff]
        %v1405 = vld [vmem:[#allocation2 + $0x20] sm:$0xf]
        %v1406 = vld [vmem:[#allocation2 + $0x24] sm:$0xff]
        %v1407 = vld [vmem:[#allocation2 + $0x2c] sm:$0xf]
        %v1408 = vld [vmem:[#allocation2 + $0x30] sm:$0x33]
        %v1409 = vld [vmem:[#allocation2 + $0x38] sm:$0x3]
        %1410 = vrot.lane.b32.xlu0 %v1311, 18
        %v1411 = vpop.permute.xlu0 %1410
        %v1412 = vrot.slane %v1411, 4
        %vm1413 = vcmask 146432
        %v1414 = vsel %vm1413, %v1412, %v1411
        %v1417 = vmul.bf16 %v1400, %v1414
        %v1418 = vmul.bf16 %v1401, %v1412
        %v1419 = vmul.bf16 %v1402, %v1414
        %v1420 = vmul.bf16 %v1403, %v1412
        %v1421 = vmul.bf16 %v1404, %v1414
        %v1422 = vmul.bf16 %v1405, %v1412
        %v1423 = vmul.bf16 %v1406, %v1414
        %v1424 = vmul.bf16 %v1407, %v1412
        %v1425 = vmul.bf16 %v1408, %v1414
        %v1426 = vmul.bf16 %v1409, %v1412
        %v1437 = vunpack.c.l.b16 %v1417
        %v1438 = vunpack.c.h.b16 %v1417
        %v1439 = vunpack.c.l.b16 %v1418
        %v1440 = vunpack.c.l.b16 %v1419
        %v1441 = vunpack.c.h.b16 %v1419
        %v1442 = vunpack.c.l.b16 %v1420
        %v1443 = vunpack.c.l.b16 %v1421
        %v1444 = vunpack.c.h.b16 %v1421
        %v1445 = vunpack.c.l.b16 %v1422
        %v1446 = vunpack.c.l.b16 %v1423
        %v1447 = vunpack.c.h.b16 %v1423
        %v1448 = vunpack.c.l.b16 %v1424
        %v1449 = vunpack.c.l.b16 %v1425
        %v1450 = vunpack.c.h.b16 %v1425
        %v1451 = vunpack.c.l.b16 %v1426
        %v1452 = vpack.c.b16 %v1440, %v1437
        %v1453 = vpack.c.b16 %v1441, %v1438
        %v1454 = vpack.c.b16 %v1442, %v1439
        %v1455 = vpack.c.b16 %v1446, %v1443
        %v1456 = vpack.c.b16 %v1447, %v1444
        %v1457 = vpack.c.b16 %v1448, %v1445
        %v1458 = vpack.c.b16 %v1449, %v1449
        %v1459 = vpack.c.b16 %v1450, %v1450
        %v1460 = vpack.c.b16 %v1451, %v1451
        %v1461 = vrot.slane %v1452, 6
        %v1462 = vrot.slane %v1453, 6
        %v1463 = vrot.slane %v1454, 6
        %v1464 = vrot.slane %v1455, 6
        %v1465 = vsel %vm642, %v1461, %v1464
        %v1466 = vrot.slane %v1456, 6
        %v1467 = vsel %vm642, %v1462, %v1466
        %v1468 = vrot.slane %v1457, 6
        %v1469 = vsel %vm642, %v1463, %v1468
        %v1470 = vrot.slane %v1458, 6
        %v1471 = vsel %vm642, %v1464, %v1470
        %v1472 = vrot.slane %v1459, 6
        %v1473 = vsel %vm642, %v1466, %v1472
        %v1474 = vrot.slane %v1460, 6
        %v1475 = vsel %vm642, %v1468, %v1474
        %1476 = vrot.lane.b32.xlu0 %v1461, 110
        %v1477 = vpop.permute.xlu0 %1476
        %1478 = vrot.lane.b32.xlu0 %v1462, 110
        %v1479 = vpop.permute.xlu0 %1478
        %1480 = vrot.lane.b32.xlu0 %v1463, 110
        %v1481 = vpop.permute.xlu0 %1480
        %1482 = vrot.lane.b32.xlu0 %v1465, 110
        %v1483 = vpop.permute.xlu0 %1482
        %1484 = vrot.lane.b32.xlu0 %v1467, 110
        %v1485 = vpop.permute.xlu0 %1484
        %1486 = vrot.lane.b32.xlu0 %v1469, 110
        %v1487 = vpop.permute.xlu0 %1486
        %1488 = vrot.lane.b32.xlu0 %v1471, 110
        %v1489 = vpop.permute.xlu0 %1488
        %1490 = vrot.lane.b32.xlu0 %v1473, 110
        %v1491 = vpop.permute.xlu0 %1490
        %1492 = vrot.lane.b32.xlu0 %v1475, 110
        %v1493 = vpop.permute.xlu0 %1492
        %vm1494 = vcmask 900096
        %v1495 = vsel %vm1494, %v1477, %v1479
        %v1496 = vsel %vm1494, %v1479, %v1481
        %v1497 = vsel %vm1494, %v1483, %v1485
        %v1498 = vsel %vm1494, %v1485, %v1487
        %v1499 = vsel %vm1494, %v1489, %v1491
        %v1500 = vsel %vm1494, %v1491, %v1493
        %1507 = vst [vmem:[#allocation3 + $0xb0] sm:$0xfc] %v1495
        %1508 = vst [vmem:[#allocation3 + $0xb8] sm:$0xfc] %v1496
        %1509 = vst [vmem:[#allocation3 + $0xc0] sm:$0xff] %v1497
        %1510 = vst [vmem:[#allocation3 + $0xc8] sm:$0xff] %v1498
        %1511 = vst [vmem:[#allocation3 + $0xd0] sm:$0xf] %v1499
        %1512 = vst [vmem:[#allocation3 + $0xd8] sm:$0xf] %v1500
        %v1513 = vld [vmem:[#allocation2] sm:$0xff]
        %v1514 = vld [vmem:[#allocation2 + $0x8] sm:$0xf]
        %v1515 = vld [vmem:[#allocation2 + $0xc] sm:$0xff]
        %v1516 = vld [vmem:[#allocation2 + $0x14] sm:$0xf]
        %v1517 = vld [vmem:[#allocation2 + $0x18] sm:$0xff]
        %v1518 = vld [vmem:[#allocation2 + $0x20] sm:$0xf]
        %v1519 = vld [vmem:[#allocation2 + $0x24] sm:$0xff]
        %v1520 = vld [vmem:[#allocation2 + $0x2c] sm:$0xf]
        %v1521 = vld [vmem:[#allocation2 + $0x30] sm:$0x33]
        %v1522 = vld [vmem:[#allocation2 + $0x38] sm:$0x3]
        %1523 = vrot.lane.b32.xlu0 %v1311, 34
        %v1524 = vpop.permute.xlu0 %1523
        %v1525 = vrot.slane %v1524, 4
        %vm1526 = vcmask 277504
        %v1527 = vsel %vm1526, %v1525, %v1524
        %v1530 = vmul.bf16 %v1513, %v1527
        %v1531 = vmul.bf16 %v1514, %v1525
        %v1532 = vmul.bf16 %v1515, %v1527
        %v1533 = vmul.bf16 %v1516, %v1525
        %v1534 = vmul.bf16 %v1517, %v1527
        %v1535 = vmul.bf16 %v1518, %v1525
        %v1536 = vmul.bf16 %v1519, %v1527
        %v1537 = vmul.bf16 %v1520, %v1525
        %v1538 = vmul.bf16 %v1521, %v1527
        %v1539 = vmul.bf16 %v1522, %v1525
        %v1550 = vunpack.c.l.b16 %v1530
        %v1551 = vunpack.c.h.b16 %v1530
        %v1552 = vunpack.c.l.b16 %v1531
        %v1553 = vunpack.c.l.b16 %v1532
        %v1554 = vunpack.c.h.b16 %v1532
        %v1555 = vunpack.c.l.b16 %v1533
        %v1556 = vunpack.c.l.b16 %v1534
        %v1557 = vunpack.c.h.b16 %v1534
        %v1558 = vunpack.c.l.b16 %v1535
        %v1559 = vunpack.c.l.b16 %v1536
        %v1560 = vunpack.c.h.b16 %v1536
        %v1561 = vunpack.c.l.b16 %v1537
        %v1562 = vunpack.c.l.b16 %v1538
        %v1563 = vunpack.c.h.b16 %v1538
        %v1564 = vunpack.c.l.b16 %v1539
        %v1565 = vpack.c.b16 %v1553, %v1550
        %v1566 = vpack.c.b16 %v1554, %v1551
        %v1567 = vpack.c.b16 %v1555, %v1552
        %v1568 = vpack.c.b16 %v1559, %v1556
        %v1569 = vpack.c.b16 %v1560, %v1557
        %v1570 = vpack.c.b16 %v1561, %v1558
        %v1571 = vpack.c.b16 %v1562, %v1562
        %v1572 = vpack.c.b16 %v1563, %v1563
        %v1573 = vpack.c.b16 %v1564, %v1564
        %1574 = vrot.lane.b32.xlu0 %v1565, 94
        %v1575 = vpop.permute.xlu0 %1574
        %1576 = vrot.lane.b32.xlu0 %v1566, 94
        %v1577 = vpop.permute.xlu0 %1576
        %1578 = vrot.lane.b32.xlu0 %v1567, 94
        %v1579 = vpop.permute.xlu0 %1578
        %1580 = vrot.lane.b32.xlu0 %v1568, 94
        %v1581 = vpop.permute.xlu0 %1580
        %1582 = vrot.lane.b32.xlu0 %v1569, 94
        %v1583 = vpop.permute.xlu0 %1582
        %1584 = vrot.lane.b32.xlu0 %v1570, 94
        %v1585 = vpop.permute.xlu0 %1584
        %1586 = vrot.lane.b32.xlu0 %v1571, 94
        %v1587 = vpop.permute.xlu0 %1586
        %1588 = vrot.lane.b32.xlu0 %v1572, 94
        %v1589 = vpop.permute.xlu0 %1588
        %1590 = vrot.lane.b32.xlu0 %v1573, 94
        %v1591 = vpop.permute.xlu0 %1590
        %vm1592 = vcmask 769024
        %v1593 = vsel %vm1592, %v1575, %v1577
        %v1594 = vsel %vm1592, %v1577, %v1579
        %v1595 = vsel %vm1592, %v1581, %v1583
        %v1596 = vsel %vm1592, %v1583, %v1585
        %v1597 = vsel %vm1592, %v1587, %v1589
        %v1598 = vsel %vm1592, %v1589, %v1591
        %1605 = vst [vmem:[#allocation3 + $0x120] sm:$0xff] %v1593
        %1606 = vst [vmem:[#allocation3 + $0x128] sm:$0xff] %v1594
        %1607 = vst [vmem:[#allocation3 + $0x130] sm:$0xff] %v1595
        %1608 = vst [vmem:[#allocation3 + $0x138] sm:$0xff] %v1596
        %1609 = vst [vmem:[#allocation3 + $0x140] sm:$0x3] %v1597
        %1610 = vst [vmem:[#allocation3 + $0x148] sm:$0x3] %v1598
        %v1611 = vld [vmem:[#allocation10] sm:$0xff]
        %v1612 = vld [vmem:[#allocation10 + $0x8] sm:$0xf]
        %v1613 = vld [vmem:[#allocation10 + $0xc] sm:$0xff]
        %v1614 = vld [vmem:[#allocation10 + $0x14] sm:$0xf]
        %v1615 = vld [vmem:[#allocation10 + $0x18] sm:$0xff]
        %v1616 = vld [vmem:[#allocation10 + $0x20] sm:$0xf]
        %v1617 = vld [vmem:[#allocation10 + $0x24] sm:$0xff]
        %v1618 = vld [vmem:[#allocation10 + $0x2c] sm:$0xf]
        %v1619 = vld [vmem:[#allocation10 + $0x30] sm:$0xff]
        %v1620 = vld [vmem:[#allocation10 + $0x38] sm:$0xf]
        %v1621 = vld [vmem:[#allocation10 + $0x3c] sm:$0xff]
        %v1622 = vld [vmem:[#allocation10 + $0x44] sm:$0xf]
        %v1623 = vld [vmem:[#allocation10 + $0x48] sm:$0xff]
        %v1624 = vld [vmem:[#allocation10 + $0x50] sm:$0xf]
        %v1625 = vld [vmem:[#allocation10 + $0x54] sm:$0xff]
        %v1626 = vld [vmem:[#allocation10 + $0x5c] sm:$0xf]
        %v1627 = vld [vmem:[#allocation10 + $0x60] sm:$0xff]
        %v1628 = vld [vmem:[#allocation10 + $0x68] sm:$0xf]
        %v1629 = vld [vmem:[#allocation10 + $0x6c] sm:$0xff]
        %v1630 = vld [vmem:[#allocation10 + $0x74] sm:$0xf]
        %v1631 = vld [vmem:[#allocation10 + $0x78] sm:$0xff]
        %v1632 = vld [vmem:[#allocation10 + $0x80] sm:$0xf]
        %v1633 = vld [vmem:[#allocation10 + $0x84] sm:$0xff]
        %v1634 = vld [vmem:[#allocation10 + $0x8c] sm:$0xf]
        %v1635 = vld [vmem:[#allocation10 + $0x90] sm:$0xff]
        %v1636 = vld [vmem:[#allocation10 + $0x98] sm:$0xf]
        %v1637 = vld [vmem:[#allocation10 + $0x9c] sm:$0xff]
        %v1638 = vld [vmem:[#allocation10 + $0xa4] sm:$0xf]
        %v1639 = vld [vmem:[#allocation10 + $0xa8] sm:$0xff]
        %v1640 = vld [vmem:[#allocation10 + $0xb0] sm:$0xf]
        %v1641 = vld [vmem:[#allocation10 + $0xb4] sm:$0xff]
        %v1642 = vld [vmem:[#allocation10 + $0xbc] sm:$0xf]
        %v1643 = vld [vmem:[#allocation3] sm:$0xff]
        %v1644 = vld [vmem:[#allocation3 + $0x8] sm:$0xff]
        %v1645 = vld [vmem:[#allocation3 + $0x10] sm:$0xff]
        %v1646 = vld [vmem:[#allocation3 + $0x18] sm:$0xff]
        %v1647 = vld [vmem:[#allocation3 + $0x20] sm:$0xff]
        %v1648 = vld [vmem:[#allocation3 + $0x28] sm:$0xff]
        %v1649 = vld [vmem:[#allocation3 + $0x30] sm:$0xff]
        %v1650 = vld [vmem:[#allocation3 + $0x38] sm:$0xff]
        %v1651 = vld [vmem:[#allocation3 + $0x40] sm:$0xff]
        %v1652 = vld [vmem:[#allocation3 + $0x48] sm:$0xff]
        %v1653 = vld [vmem:[#allocation3 + $0x50] sm:$0xff]
        %v1654 = vld [vmem:[#allocation3 + $0x58] sm:$0xff]
        %v1655 = vld [vmem:[#allocation3 + $0x60] sm:$0xff]
        %v1656 = vld [vmem:[#allocation3 + $0x68] sm:$0xff]
        %v1657 = vld [vmem:[#allocation3 + $0x70] sm:$0xff]
        %v1658 = vld [vmem:[#allocation3 + $0x78] sm:$0xff]
        %v1659 = vld [vmem:[#allocation3 + $0x80] sm:$0xff]
        %v1660 = vld [vmem:[#allocation3 + $0x88] sm:$0xff]
        %v1661 = vld [vmem:[#allocation3 + $0x90] sm:$0xff]
        %v1662 = vld [vmem:[#allocation3 + $0x98] sm:$0xff]
        %v1663 = vld [vmem:[#allocation3 + $0xa0] sm:$0xff]
        %v1664 = vld [vmem:[#allocation3 + $0xa8] sm:$0xff]
        %v1665 = vld [vmem:[#allocation3 + $0xb0] sm:$0xff]
        %v1666 = vld [vmem:[#allocation3 + $0xb8] sm:$0xff]
        %v1667 = vld [vmem:[#allocation3 + $0xc0] sm:$0xff]
        %v1668 = vld [vmem:[#allocation3 + $0xc8] sm:$0xff]
        %v1669 = vld [vmem:[#allocation3 + $0xd0] sm:$0xff]
        %v1670 = vld [vmem:[#allocation3 + $0xd8] sm:$0xff]
        %v1671 = vld [vmem:[#allocation3 + $0xe0] sm:$0xff]
        %v1672 = vld [vmem:[#allocation3 + $0xe8] sm:$0xff]
        %v1673 = vld [vmem:[#allocation3 + $0xf0] sm:$0xff]
        %v1674 = vld [vmem:[#allocation3 + $0xf8] sm:$0xff]
        %v1675 = vld [vmem:[#allocation3 + $0x100] sm:$0xff]
        %v1676 = vld [vmem:[#allocation3 + $0x108] sm:$0xff]
        %v1677 = vld [vmem:[#allocation3 + $0x110] sm:$0xff]
        %v1678 = vld [vmem:[#allocation3 + $0x118] sm:$0xff]
        %v1679 = vld [vmem:[#allocation3 + $0x120] sm:$0xff]
        %v1680 = vld [vmem:[#allocation3 + $0x128] sm:$0xff]
        %v1681 = vld [vmem:[#allocation3 + $0x130] sm:$0xff]
        %v1682 = vld [vmem:[#allocation3 + $0x138] sm:$0xff]
        %v1683 = vld [vmem:[#allocation3 + $0x140] sm:$0xff]
        %v1684 = vld [vmem:[#allocation3 + $0x148] sm:$0xff]
        %v1685 = vld [vmem:[#allocation3 + $0x150] sm:$0xff]
        %v1686 = vld [vmem:[#allocation3 + $0x158] sm:$0xff]
        %v1687 = vld [vmem:[#allocation3 + $0x160] sm:$0xff]
        %v1688 = vld [vmem:[#allocation3 + $0x168] sm:$0xff]
        %v1689 = vld [vmem:[#allocation3 + $0x170] sm:$0xff]
        %v1690 = vld [vmem:[#allocation3 + $0x178] sm:$0xff]
        %v1723 = vunpack.c.l.b16 %v1611
        %v1724 = vunpack.c.h.b16 %v1611
        %v1725 = vunpack.c.l.b16 %v1612
        %v1726 = vunpack.c.l.b16 %v1613
        %v1727 = vunpack.c.h.b16 %v1613
        %v1728 = vunpack.c.l.b16 %v1614
        %v1729 = vunpack.c.l.b16 %v1615
        %v1730 = vunpack.c.h.b16 %v1615
        %v1731 = vunpack.c.l.b16 %v1616
        %v1732 = vunpack.c.l.b16 %v1617
        %v1733 = vunpack.c.h.b16 %v1617
        %v1734 = vunpack.c.l.b16 %v1618
        %v1735 = vunpack.c.l.b16 %v1619
        %v1736 = vunpack.c.h.b16 %v1619
        %v1737 = vunpack.c.l.b16 %v1620
        %v1738 = vunpack.c.l.b16 %v1621
        %v1739 = vunpack.c.h.b16 %v1621
        %v1740 = vunpack.c.l.b16 %v1622
        %v1741 = vunpack.c.l.b16 %v1623
        %v1742 = vunpack.c.h.b16 %v1623
        %v1743 = vunpack.c.l.b16 %v1624
        %v1744 = vunpack.c.l.b16 %v1625
        %v1745 = vunpack.c.h.b16 %v1625
        %v1746 = vunpack.c.l.b16 %v1626
        %v1747 = vunpack.c.l.b16 %v1627
        %v1748 = vunpack.c.h.b16 %v1627
        %v1749 = vunpack.c.l.b16 %v1628
        %v1750 = vunpack.c.l.b16 %v1629
        %v1751 = vunpack.c.h.b16 %v1629
        %v1752 = vunpack.c.l.b16 %v1630
        %v1753 = vunpack.c.l.b16 %v1631
        %v1754 = vunpack.c.h.b16 %v1631
        %v1755 = vunpack.c.l.b16 %v1632
        %v1756 = vunpack.c.l.b16 %v1633
        %v1757 = vunpack.c.h.b16 %v1633
        %v1758 = vunpack.c.l.b16 %v1634
        %v1759 = vunpack.c.l.b16 %v1635
        %v1760 = vunpack.c.h.b16 %v1635
        %v1761 = vunpack.c.l.b16 %v1636
        %v1762 = vunpack.c.l.b16 %v1637
        %v1763 = vunpack.c.h.b16 %v1637
        %v1764 = vunpack.c.l.b16 %v1638
        %v1765 = vunpack.c.l.b16 %v1639
        %v1766 = vunpack.c.h.b16 %v1639
        %v1767 = vunpack.c.l.b16 %v1640
        %v1768 = vunpack.c.l.b16 %v1641
        %v1769 = vunpack.c.h.b16 %v1641
        %v1770 = vunpack.c.l.b16 %v1642
        %v1771 = vpack.c.b16 %v1726, %v1723
        %v1772 = vpack.c.b16 %v1727, %v1724
        %v1773 = vpack.c.b16 %v1728, %v1725
        %v1774 = vpack.c.b16 %v1732, %v1729
        %v1775 = vpack.c.b16 %v1733, %v1730
        %v1776 = vpack.c.b16 %v1734, %v1731
        %v1777 = vpack.c.b16 %v1738, %v1735
        %v1778 = vpack.c.b16 %v1739, %v1736
        %v1779 = vpack.c.b16 %v1740, %v1737
        %v1780 = vpack.c.b16 %v1744, %v1741
        %v1781 = vpack.c.b16 %v1745, %v1742
        %v1782 = vpack.c.b16 %v1746, %v1743
        %v1783 = vpack.c.b16 %v1750, %v1747
        %v1784 = vpack.c.b16 %v1751, %v1748
        %v1785 = vpack.c.b16 %v1752, %v1749
        %v1786 = vpack.c.b16 %v1756, %v1753
        %v1787 = vpack.c.b16 %v1757, %v1754
        %v1788 = vpack.c.b16 %v1758, %v1755
        %v1789 = vpack.c.b16 %v1762, %v1759
        %v1790 = vpack.c.b16 %v1763, %v1760
        %v1791 = vpack.c.b16 %v1764, %v1761
        %v1792 = vpack.c.b16 %v1768, %v1765
        %v1793 = vpack.c.b16 %v1769, %v1766
        %v1794 = vpack.c.b16 %v1770, %v1767
        %1819 = vmatprep.subr.bf16.mxu0 %v1644
        %1820 = vmatpush1.bf16.msra.mxu0 %v1643
        %1821 = vmatprep.subr.bf16.mxu0 %v1646
        %1822 = vmatpush1.bf16.msra.mxu0 %v1645
        %1823 = vmatprep.subr.bf16.mxu0 %v1648
        %1824 = vmatpush1.bf16.msra.mxu0 %v1647
        %1825 = vmatprep.subr.bf16.mxu0 %v1650
        %1826 = vmatpush1.bf16.msra.mxu0 %v1649
        %1827 = vmatprep.subr.bf16.mxu0 %v1652
        %1828 = vmatpush1.bf16.msra.mxu0 %v1651
        %1829 = vmatprep.subr.bf16.mxu0 %v1654
        %1830 = vmatpush1.bf16.msra.mxu0 %v1653
        %1831 = vmatprep.subr.bf16.mxu0 %v1656
        %1832 = vmatpush1.bf16.msra.mxu0 %v1655
        %1833 = vmatprep.subr.bf16.mxu0 %v1658
        %1834 = vmatpush1.bf16.msra.mxu0 %v1657
        %1835 = vmatprep.subr.bf16.mxu0 %v1660
        %1836 = vmatpush1.bf16.msra.mxu0 %v1659
        %1837 = vmatprep.subr.bf16.mxu0 %v1662
        %1838 = vmatpush1.bf16.msra.mxu0 %v1661
        %1839 = vmatprep.subr.bf16.mxu0 %v1664
        %1840 = vmatpush1.bf16.msra.mxu0 %v1663
        %1841 = vmatprep.subr.bf16.mxu0 %v1666
        %1842 = vmatpush1.bf16.msra.mxu0 %v1665
        %1843 = vmatprep.subr.bf16.mxu0 %v1668
        %1844 = vmatpush1.bf16.msra.mxu0 %v1667
        %1845 = vmatprep.subr.bf16.mxu0 %v1670
        %1846 = vmatpush1.bf16.msra.mxu0 %v1669
        %1847 = vmatprep.subr.bf16.mxu0 %v1672
        %1848 = vmatpush1.bf16.msra.mxu0 %v1671
        %1849 = vmatprep.subr.bf16.mxu0 %v1674
        %1850 = vmatpush1.bf16.msra.mxu0 %v1673
        %1851 = vmatprep.mubr.bf16.mxu0 %v1772
        %1852 = vmatmul.mubr.bf16.gmra.mrb[0].mxu0 %v1771
        %v1853 = vpop.f32.mrb[0].mxu0
        %v1854 = vadd.f32 0.0, %v1853
        %v1855 = vpop.f32.mrb[0].mxu0
        %v1856 = vadd.f32 0.0, %v1855
        %v1857 = vpop.f32.mrb[0].mxu0
        %v1858 = vadd.f32 0.0, %v1857
        %v1859 = vpop.f32.mrb[0].mxu0
        %v1860 = vadd.f32 0.0, %v1859
        %1861 = vmatprep.mubr.bf16.mxu0 %v1775
        %1862 = vmatmul.mubr.bf16.gmra.mrb[0].mxu0 %v1774
        %v1863 = vpop.f32.mrb[0].mxu0
        %v1864 = vadd.f32 0.0, %v1863
        %v1865 = vpop.f32.mrb[0].mxu0
        %v1866 = vadd.f32 0.0, %v1865
        %v1867 = vpop.f32.mrb[0].mxu0
        %v1868 = vadd.f32 0.0, %v1867
        %v1869 = vpop.f32.mrb[0].mxu0
        %v1870 = vadd.f32 0.0, %v1869
        %1871 = vmatprep.mubr.bf16.mxu0 %v1778
        %1872 = vmatmul.mubr.bf16.gmra.mrb[0].mxu0 %v1777
        %v1873 = vpop.f32.mrb[0].mxu0
        %v1874 = vadd.f32 0.0, %v1873
        %v1875 = vpop.f32.mrb[0].mxu0
        %v1876 = vadd.f32 0.0, %v1875
        %v1877 = vpop.f32.mrb[0].mxu0
        %v1878 = vadd.f32 0.0, %v1877
        %v1879 = vpop.f32.mrb[0].mxu0
        %v1880 = vadd.f32 0.0, %v1879
        %1881 = vmatprep.mubr.bf16.mxu0 %v1781
        %1882 = vmatmul.mubr.bf16.gmra.mrb[0].mxu0 %v1780
        %v1883 = vpop.f32.mrb[0].mxu0
        %v1884 = vadd.f32 0.0, %v1883
        %v1885 = vpop.f32.mrb[0].mxu0
        %v1886 = vadd.f32 0.0, %v1885
        %v1887 = vpop.f32.mrb[0].mxu0
        %v1888 = vadd.f32 0.0, %v1887
        %v1889 = vpop.f32.mrb[0].mxu0
        %v1890 = vadd.f32 0.0, %v1889
        %1891 = vmatprep.mubr.bf16.mxu0 %v1784
        %1892 = vmatmul.mubr.bf16.gmra.mrb[0].mxu0 %v1783
        %v1893 = vpop.f32.mrb[0].mxu0
        %v1894 = vadd.f32 0.0, %v1893
        %v1895 = vpop.f32.mrb[0].mxu0
        %v1896 = vadd.f32 0.0, %v1895
        %v1897 = vpop.f32.mrb[0].mxu0
        %v1898 = vadd.f32 0.0, %v1897
        %v1899 = vpop.f32.mrb[0].mxu0
        %v1900 = vadd.f32 0.0, %v1899
        %1901 = vmatprep.mubr.bf16.mxu0 %v1787
        %1902 = vmatmul.mubr.bf16.gmra.mrb[0].mxu0 %v1786
        %v1903 = vpop.f32.mrb[0].mxu0
        %v1904 = vadd.f32 0.0, %v1903
        %v1905 = vpop.f32.mrb[0].mxu0
        %v1906 = vadd.f32 0.0, %v1905
        %v1907 = vpop.f32.mrb[0].mxu0
        %v1908 = vadd.f32 0.0, %v1907
        %v1909 = vpop.f32.mrb[0].mxu0
        %v1910 = vadd.f32 0.0, %v1909
        %1911 = vmatprep.mubr.bf16.mxu0 %v1790
        %1912 = vmatmul.mubr.bf16.gmra.mrb[0].mxu0 %v1789
        %v1913 = vpop.f32.mrb[0].mxu0
        %v1914 = vadd.f32 0.0, %v1913
        %v1915 = vpop.f32.mrb[0].mxu0
        %v1916 = vadd.f32 0.0, %v1915
        %v1917 = vpop.f32.mrb[0].mxu0
        %v1918 = vadd.f32 0.0, %v1917
        %v1919 = vpop.f32.mrb[0].mxu0
        %v1920 = vadd.f32 0.0, %v1919
        %1921 = vmatprep.mubr.bf16.mxu0 %v1793
        %1922 = vmatmul.mubr.bf16.gmra.mrb[0].mxu0 %v1792
        %v1923 = vpop.f32.mrb[0].mxu0
        %v1924 = vadd.f32 0.0, %v1923
        %v1925 = vpop.f32.mrb[0].mxu0
        %v1926 = vadd.f32 0.0, %v1925
        %v1927 = vpop.f32.mrb[0].mxu0
        %v1928 = vadd.f32 0.0, %v1927
        %v1929 = vpop.f32.mrb[0].mxu0
        %v1930 = vadd.f32 0.0, %v1929
        %1931 = vdwg.mxu0
        %1932 = vmatprep.subr.bf16.mxu0 %v1676
        %1933 = vmatpush1.bf16.msra.mxu0 %v1675
        %1934 = vmatprep.subr.bf16.mxu0 %v1678
        %1935 = vmatpush1.bf16.msra.mxu0 %v1677
        %1936 = vmatprep.subr.bf16.mxu0 %v1680
        %1937 = vmatpush1.bf16.msra.mxu0 %v1679
        %1938 = vmatprep.subr.bf16.mxu0 %v1682
        %1939 = vmatpush1.bf16.msra.mxu0 %v1681
        %1940 = vmatprep.subr.bf16.mxu0 %v1684
        %1941 = vmatpush1.bf16.msra.mxu0 %v1683
        %1942 = vmatprep.subr.bf16.mxu0 %v1686
        %1943 = vmatpush1.bf16.msra.mxu0 %v1685
        %1944 = vmatprep.subr.bf16.mxu0 %v1688
        %1945 = vmatpush1.bf16.msra.mxu0 %v1687
        %1946 = vmatprep.subr.bf16.mxu0 %v1690
        %1947 = vmatpush1.bf16.msra.mxu0 %v1689
        %1948 = vmatprep.subr.bf16.mxu0 0
        %1949 = vmatpush1.bf16.msra.mxu0 0
        %1950 = vmatprep.subr.bf16.mxu0 0
        %1951 = vmatpush1.bf16.msra.mxu0 0
        %1952 = vmatprep.subr.bf16.mxu0 0
        %1953 = vmatpush1.bf16.msra.mxu0 0
        %1954 = vmatprep.subr.bf16.mxu0 0
        %1955 = vmatpush1.bf16.msra.mxu0 0
        %1956 = vmatprep.subr.bf16.mxu0 0
        %1957 = vmatpush1.bf16.msra.mxu0 0
        %1958 = vmatprep.subr.bf16.mxu0 0
        %1959 = vmatpush1.bf16.msra.mxu0 0
        %1960 = vmatprep.subr.bf16.mxu0 0
        %1961 = vmatpush1.bf16.msra.mxu0 0
        %1962 = vmatprep.subr.bf16.mxu0 0
        %1963 = vmatpush1.bf16.msra.mxu0 0
        %1964 = vmatprep.mubr.bf16.mxu0 0
        %1965 = vmatmul.mubr.bf16.gmra.mrb[0].mxu0 %v1773
        %v1966 = vpop.f32.mrb[0].mxu0
        %v1967 = vadd.f32 %v1854, %v1966
        %v1968 = vpop.f32.mrb[0].mxu0
        %v1969 = vadd.f32 %v1856, %v1968
        %v1970 = vpop.f32.mrb[0].mxu0
        %v1971 = vadd.f32 %v1858, %v1970
        %v1972 = vpop.f32.mrb[0].mxu0
        %v1973 = vadd.f32 %v1860, %v1972
        %1974 = vmatprep.mubr.bf16.mxu0 0
        %1975 = vmatmul.mubr.bf16.gmra.mrb[0].mxu0 %v1776
        %v1976 = vpop.f32.mrb[0].mxu0
        %v1977 = vadd.f32 %v1864, %v1976
        %v1978 = vpop.f32.mrb[0].mxu0
        %v1979 = vadd.f32 %v1866, %v1978
        %v1980 = vpop.f32.mrb[0].mxu0
        %v1981 = vadd.f32 %v1868, %v1980
        %v1982 = vpop.f32.mrb[0].mxu0
        %v1983 = vadd.f32 %v1870, %v1982
        %1984 = vmatprep.mubr.bf16.mxu0 0
        %1985 = vmatmul.mubr.bf16.gmra.mrb[0].mxu0 %v1779
        %v1986 = vpop.f32.mrb[0].mxu0
        %v1987 = vadd.f32 %v1874, %v1986
        %v1988 = vpop.f32.mrb[0].mxu0
        %v1989 = vadd.f32 %v1876, %v1988
        %v1990 = vpop.f32.mrb[0].mxu0
        %v1991 = vadd.f32 %v1878, %v1990
        %v1992 = vpop.f32.mrb[0].mxu0
        %v1993 = vadd.f32 %v1880, %v1992
        %1994 = vmatprep.mubr.bf16.mxu0 0
        %1995 = vmatmul.mubr.bf16.gmra.mrb[0].mxu0 %v1782
        %v1996 = vpop.f32.mrb[0].mxu0
        %v1997 = vadd.f32 %v1884, %v1996
        %v1998 = vpop.f32.mrb[0].mxu0
        %v1999 = vadd.f32 %v1886, %v1998
        %v2000 = vpop.f32.mrb[0].mxu0
        %v2001 = vadd.f32 %v1888, %v2000
        %v2002 = vpop.f32.mrb[0].mxu0
        %v2003 = vadd.f32 %v1890, %v2002
        %2004 = vmatprep.mubr.bf16.mxu0 0
        %2005 = vmatmul.mubr.bf16.gmra.mrb[0].mxu0 %v1785
        %v2006 = vpop.f32.mrb[0].mxu0
        %v2007 = vadd.f32 %v1894, %v2006
        %v2008 = vpop.f32.mrb[0].mxu0
        %v2009 = vadd.f32 %v1896, %v2008
        %v2010 = vpop.f32.mrb[0].mxu0
        %v2011 = vadd.f32 %v1898, %v2010
        %v2012 = vpop.f32.mrb[0].mxu0
        %v2013 = vadd.f32 %v1900, %v2012
        %2014 = vmatprep.mubr.bf16.mxu0 0
        %2015 = vmatmul.mubr.bf16.gmra.mrb[0].mxu0 %v1788
        %v2016 = vpop.f32.mrb[0].mxu0
        %v2017 = vadd.f32 %v1904, %v2016
        %v2018 = vpop.f32.mrb[0].mxu0
        %v2019 = vadd.f32 %v1906, %v2018
        %v2020 = vpop.f32.mrb[0].mxu0
        %v2021 = vadd.f32 %v1908, %v2020
        %v2022 = vpop.f32.mrb[0].mxu0
        %v2023 = vadd.f32 %v1910, %v2022
        %2024 = vmatprep.mubr.bf16.mxu0 0
        %2025 = vmatmul.mubr.bf16.gmra.mrb[0].mxu0 %v1791
        %v2026 = vpop.f32.mrb[0].mxu0
        %v2027 = vadd.f32 %v1914, %v2026
        %v2028 = vpop.f32.mrb[0].mxu0
        %v2029 = vadd.f32 %v1916, %v2028
        %v2030 = vpop.f32.mrb[0].mxu0
        %v2031 = vadd.f32 %v1918, %v2030
        %v2032 = vpop.f32.mrb[0].mxu0
        %v2033 = vadd.f32 %v1920, %v2032
        %2034 = vmatprep.mubr.bf16.mxu0 0
        %2035 = vmatmul.mubr.bf16.gmra.mrb[0].mxu0 %v1794
        %v2036 = vpop.f32.mrb[0].mxu0
        %v2037 = vadd.f32 %v1924, %v2036
        %v2038 = vpop.f32.mrb[0].mxu0
        %v2039 = vadd.f32 %v1926, %v2038
        %v2040 = vpop.f32.mrb[0].mxu0
        %v2041 = vadd.f32 %v1928, %v2040
        %v2042 = vpop.f32.mrb[0].mxu0
        %v2043 = vadd.f32 %v1930, %v2042
        %2044 = vdwg.mxu0
        %v2045 = vld [vmem:[%s438] sm:$0xff]
        %v2046 = vld [vmem:[%s438 + $0x8] sm:$0xff]
        %v2047 = vld [vmem:[%s438 + $0x10] sm:$0xff]
        %v2048 = vld [vmem:[%s438 + $0x18] sm:$0xff]
        %v2049 = vld [vmem:[%s438 + $0x20] sm:$0xff]
        %v2050 = vld [vmem:[%s438 + $0x28] sm:$0xff]
        %v2051 = vld [vmem:[%s438 + $0x30] sm:$0xff]
        %v2052 = vld [vmem:[%s438 + $0x38] sm:$0xff]
        %v2053 = vld [vmem:[#allocation13] sm:$0xff]
        %v2054 = vld [vmem:[#allocation13 + $0x8] sm:$0xff]
        %v2055 = vld [vmem:[#allocation13 + $0x10] sm:$0xff]
        %v2056 = vld [vmem:[#allocation13 + $0x18] sm:$0xff]
        %v2057 = vld [vmem:[#allocation13 + $0x20] sm:$0xff]
        %v2058 = vld [vmem:[#allocation13 + $0x28] sm:$0xff]
        %v2059 = vld [vmem:[#allocation13 + $0x30] sm:$0xff]
        %v2060 = vld [vmem:[#allocation13 + $0x38] sm:$0xff]
        %v2061 = vmul.f32 %v2045, %v2053
        %v2062 = vmul.f32 %v2046, %v2054
        %v2063 = vmul.f32 %v2047, %v2055
        %v2064 = vmul.f32 %v2048, %v2056
        %v2065 = vmul.f32 %v2049, %v2057
        %v2066 = vmul.f32 %v2050, %v2058
        %v2067 = vmul.f32 %v2051, %v2059
        %v2068 = vmul.f32 %v2052, %v2060
        %v2069 = vadd.f32 %v1967, %v2061
        %v2070 = vadd.f32 %v1969, %v2062
        %v2071 = vadd.f32 %v1971, %v2063
        %v2072 = vadd.f32 %v1973, %v2064
        %v2073 = vadd.f32 %v1977, %v2065
        %v2074 = vadd.f32 %v1979, %v2066
        %v2075 = vadd.f32 %v1981, %v2067
        %v2076 = vadd.f32 %v1983, %v2068
        %v2077 = vxor.u32 %v2069, 2147483648
        %v2078 = vxor.u32 %v2070, 2147483648
        %v2079 = vxor.u32 %v2071, 2147483648
        %v2080 = vxor.u32 %v2072, 2147483648
        %v2081 = vxor.u32 %v2073, 2147483648
        %v2082 = vxor.u32 %v2074, 2147483648
        %v2083 = vxor.u32 %v2075, 2147483648
        %v2084 = vxor.u32 %v2076, 2147483648
        %v2085 = vmul.f32 %v2077, 1.442695
        %v2086 = vpow.pop %v2085
        %v2087 = vmul.f32 %v2078, 1.442695
        %v2088 = vpow.pop %v2087
        %v2089 = vmul.f32 %v2079, 1.442695
        %v2090 = vpow.pop %v2089
        %v2091 = vmul.f32 %v2080, 1.442695
        %v2092 = vpow.pop %v2091
        %v2093 = vmul.f32 %v2081, 1.442695
        %v2094 = vpow.pop %v2093
        %v2095 = vmul.f32 %v2082, 1.442695
        %v2096 = vpow.pop %v2095
        %v2097 = vmul.f32 %v2083, 1.442695
        %v2098 = vpow.pop %v2097
        %v2099 = vmul.f32 %v2084, 1.442695
        %v2100 = vpow.pop %v2099
        %v2101 = vadd.f32 %v2086, 1.0
        %v2102 = vadd.f32 %v2088, 1.0
        %v2103 = vadd.f32 %v2090, 1.0
        %v2104 = vadd.f32 %v2092, 1.0
        %v2105 = vadd.f32 %v2094, 1.0
        %v2106 = vadd.f32 %v2096, 1.0
        %v2107 = vadd.f32 %v2098, 1.0
        %v2108 = vadd.f32 %v2100, 1.0
        %v2109 = vrcp.pop %v2101
        %v2110 = vmul.f32 1.0, %v2109
        %v2111 = vrcp.pop %v2102
        %v2112 = vmul.f32 1.0, %v2111
        %v2113 = vrcp.pop %v2103
        %v2114 = vmul.f32 1.0, %v2113
        %v2115 = vrcp.pop %v2104
        %v2116 = vmul.f32 1.0, %v2115
        %v2117 = vrcp.pop %v2105
        %v2118 = vmul.f32 1.0, %v2117
        %v2119 = vrcp.pop %v2106
        %v2120 = vmul.f32 1.0, %v2119
        %v2121 = vrcp.pop %v2107
        %v2122 = vmul.f32 1.0, %v2121
        %v2123 = vrcp.pop %v2108
        %v2124 = vmul.f32 1.0, %v2123
        %v2125 = vld [vmem:[#allocation15] sm:$0xff]
        %v2126 = vld [vmem:[#allocation15 + $0x8] sm:$0xff]
        %v2127 = vld [vmem:[#allocation15 + $0x10] sm:$0xff]
        %v2128 = vld [vmem:[#allocation15 + $0x18] sm:$0xff]
        %v2129 = vld [vmem:[#allocation15 + $0x20] sm:$0xff]
        %v2130 = vld [vmem:[#allocation15 + $0x28] sm:$0xff]
        %v2131 = vld [vmem:[#allocation15 + $0x30] sm:$0xff]
        %v2132 = vld [vmem:[#allocation15 + $0x38] sm:$0xff]
        %v2133 = vmul.f32 %v2045, %v2125
        %v2134 = vmul.f32 %v2046, %v2126
        %v2135 = vmul.f32 %v2047, %v2127
        %v2136 = vmul.f32 %v2048, %v2128
        %v2137 = vmul.f32 %v2049, %v2129
        %v2138 = vmul.f32 %v2050, %v2130
        %v2139 = vmul.f32 %v2051, %v2131
        %v2140 = vmul.f32 %v2052, %v2132
        %v2141 = vadd.f32 %v1987, %v2133
        %v2142 = vadd.f32 %v1989, %v2134
        %v2143 = vadd.f32 %v1991, %v2135
        %v2144 = vadd.f32 %v1993, %v2136
        %v2145 = vadd.f32 %v1997, %v2137
        %v2146 = vadd.f32 %v1999, %v2138
        %v2147 = vadd.f32 %v2001, %v2139
        %v2148 = vadd.f32 %v2003, %v2140
        %v2149 = vxor.u32 %v2141, 2147483648
        %v2150 = vxor.u32 %v2142, 2147483648
        %v2151 = vxor.u32 %v2143, 2147483648
        %v2152 = vxor.u32 %v2144, 2147483648
        %v2153 = vxor.u32 %v2145, 2147483648
        %v2154 = vxor.u32 %v2146, 2147483648
        %v2155 = vxor.u32 %v2147, 2147483648
        %v2156 = vxor.u32 %v2148, 2147483648
        %v2157 = vmul.f32 %v2149, 1.442695
        %v2158 = vpow.pop %v2157
        %v2159 = vmul.f32 %v2150, 1.442695
        %v2160 = vpow.pop %v2159
        %v2161 = vmul.f32 %v2151, 1.442695
        %v2162 = vpow.pop %v2161
        %v2163 = vmul.f32 %v2152, 1.442695
        %v2164 = vpow.pop %v2163
        %v2165 = vmul.f32 %v2153, 1.442695
        %v2166 = vpow.pop %v2165
        %v2167 = vmul.f32 %v2154, 1.442695
        %v2168 = vpow.pop %v2167
        %v2169 = vmul.f32 %v2155, 1.442695
        %v2170 = vpow.pop %v2169
        %v2171 = vmul.f32 %v2156, 1.442695
        %v2172 = vpow.pop %v2171
        %v2173 = vadd.f32 %v2158, 1.0
        %v2174 = vadd.f32 %v2160, 1.0
        %v2175 = vadd.f32 %v2162, 1.0
        %v2176 = vadd.f32 %v2164, 1.0
        %v2177 = vadd.f32 %v2166, 1.0
        %v2178 = vadd.f32 %v2168, 1.0
        %v2179 = vadd.f32 %v2170, 1.0
        %v2180 = vadd.f32 %v2172, 1.0
        %v2181 = vrcp.pop %v2173
        %v2182 = vmul.f32 1.0, %v2181
        %v2183 = vrcp.pop %v2174
        %v2184 = vmul.f32 1.0, %v2183
        %v2185 = vrcp.pop %v2175
        %v2186 = vmul.f32 1.0, %v2185
        %v2187 = vrcp.pop %v2176
        %v2188 = vmul.f32 1.0, %v2187
        %v2189 = vrcp.pop %v2177
        %v2190 = vmul.f32 1.0, %v2189
        %v2191 = vrcp.pop %v2178
        %v2192 = vmul.f32 1.0, %v2191
        %v2193 = vrcp.pop %v2179
        %v2194 = vmul.f32 1.0, %v2193
        %v2195 = vrcp.pop %v2180
        %v2196 = vmul.f32 1.0, %v2195
        %v2197 = vmul.f32 %v2182, %v2045
        %v2198 = vmul.f32 %v2184, %v2046
        %v2199 = vmul.f32 %v2186, %v2047
        %v2200 = vmul.f32 %v2188, %v2048
        %v2201 = vmul.f32 %v2190, %v2049
        %v2202 = vmul.f32 %v2192, %v2050
        %v2203 = vmul.f32 %v2194, %v2051
        %v2204 = vmul.f32 %v2196, %v2052
        %v2205 = vmax.f32 %v2007, 0.0
        %v2206 = vmax.f32 %v2009, 0.0
        %v2207 = vmax.f32 %v2011, 0.0
        %v2208 = vmax.f32 %v2013, 0.0
        %v2209 = vmax.f32 %v2017, 0.0
        %v2210 = vmax.f32 %v2019, 0.0
        %v2211 = vmax.f32 %v2021, 0.0
        %v2212 = vmax.f32 %v2023, 0.0
        %v2213 = vmul.f32 %v2110, %v2205
        %v2214 = vmul.f32 %v2112, %v2206
        %v2215 = vmul.f32 %v2114, %v2207
        %v2216 = vmul.f32 %v2116, %v2208
        %v2217 = vmul.f32 %v2118, %v2209
        %v2218 = vmul.f32 %v2120, %v2210
        %v2219 = vmul.f32 %v2122, %v2211
        %v2220 = vmul.f32 %v2124, %v2212
        %v2221 = vadd.f32 %v2197, %v2213
        %v2222 = vadd.f32 %v2198, %v2214
        %v2223 = vadd.f32 %v2199, %v2215
        %v2224 = vadd.f32 %v2200, %v2216
        %v2225 = vadd.f32 %v2201, %v2217
        %v2226 = vadd.f32 %v2202, %v2218
        %v2227 = vadd.f32 %v2203, %v2219
        %v2228 = vadd.f32 %v2204, %v2220
        %v2229 = vld [vmem:[#allocation16] sm:$0xff]
        %v2230 = vld [vmem:[#allocation16 + $0x8] sm:$0xff]
        %v2231 = vld [vmem:[#allocation16 + $0x10] sm:$0xff]
        %v2232 = vld [vmem:[#allocation16 + $0x18] sm:$0xff]
        %v2233 = vld [vmem:[#allocation16 + $0x20] sm:$0xff]
        %v2234 = vld [vmem:[#allocation16 + $0x28] sm:$0xff]
        %v2235 = vld [vmem:[#allocation16 + $0x30] sm:$0xff]
        %v2236 = vld [vmem:[#allocation16 + $0x38] sm:$0xff]
        %v2237 = vmul.f32 %v2221, %v2229
        %v2238 = vmul.f32 %v2222, %v2230
        %v2239 = vmul.f32 %v2223, %v2231
        %v2240 = vmul.f32 %v2224, %v2232
        %v2241 = vmul.f32 %v2225, %v2233
        %v2242 = vmul.f32 %v2226, %v2234
        %v2243 = vmul.f32 %v2227, %v2235
        %v2244 = vmul.f32 %v2228, %v2236
        %v2245 = vadd.f32 %v2027, %v2237
        %v2246 = vadd.f32 %v2029, %v2238
        %v2247 = vadd.f32 %v2031, %v2239
        %v2248 = vadd.f32 %v2033, %v2240
        %v2249 = vadd.f32 %v2037, %v2241
        %v2250 = vadd.f32 %v2039, %v2242
        %v2251 = vadd.f32 %v2041, %v2243
        %v2252 = vadd.f32 %v2043, %v2244
        %v2253 = vxor.u32 %v2245, 2147483648
        %v2254 = vxor.u32 %v2246, 2147483648
        %v2255 = vxor.u32 %v2247, 2147483648
        %v2256 = vxor.u32 %v2248, 2147483648
        %v2257 = vxor.u32 %v2249, 2147483648
        %v2258 = vxor.u32 %v2250, 2147483648
        %v2259 = vxor.u32 %v2251, 2147483648
        %v2260 = vxor.u32 %v2252, 2147483648
        %v2261 = vmul.f32 %v2253, 1.442695
        %v2262 = vpow.pop %v2261
        %v2263 = vmul.f32 %v2254, 1.442695
        %v2264 = vpow.pop %v2263
        %v2265 = vmul.f32 %v2255, 1.442695
        %v2266 = vpow.pop %v2265
        %v2267 = vmul.f32 %v2256, 1.442695
        %v2268 = vpow.pop %v2267
        %v2269 = vmul.f32 %v2257, 1.442695
        %v2270 = vpow.pop %v2269
        %v2271 = vmul.f32 %v2258, 1.442695
        %v2272 = vpow.pop %v2271
        %v2273 = vmul.f32 %v2259, 1.442695
        %v2274 = vpow.pop %v2273
        %v2275 = vmul.f32 %v2260, 1.442695
        %v2276 = vpow.pop %v2275
        %v2277 = vadd.f32 %v2262, 1.0
        %v2278 = vadd.f32 %v2264, 1.0
        %v2279 = vadd.f32 %v2266, 1.0
        %v2280 = vadd.f32 %v2268, 1.0
        %v2281 = vadd.f32 %v2270, 1.0
        %v2282 = vadd.f32 %v2272, 1.0
        %v2283 = vadd.f32 %v2274, 1.0
        %v2284 = vadd.f32 %v2276, 1.0
        %v2285 = vrcp.pop %v2277
        %v2286 = vmul.f32 1.0, %v2285
        %v2287 = vrcp.pop %v2278
        %v2288 = vmul.f32 1.0, %v2287
        %v2289 = vrcp.pop %v2279
        %v2290 = vmul.f32 1.0, %v2289
        %v2291 = vrcp.pop %v2280
        %v2292 = vmul.f32 1.0, %v2291
        %v2293 = vrcp.pop %v2281
        %v2294 = vmul.f32 1.0, %v2293
        %v2295 = vrcp.pop %v2282
        %v2296 = vmul.f32 1.0, %v2295
        %v2297 = vrcp.pop %v2283
        %v2298 = vmul.f32 1.0, %v2297
        %v2299 = vrcp.pop %v2284
        %v2300 = vmul.f32 1.0, %v2299
        %v2301 = vmax.f32 %v2221, 0.0
        %v2302 = vmax.f32 %v2222, 0.0
        %v2303 = vmax.f32 %v2223, 0.0
        %v2304 = vmax.f32 %v2224, 0.0
        %v2305 = vmax.f32 %v2225, 0.0
        %v2306 = vmax.f32 %v2226, 0.0
        %v2307 = vmax.f32 %v2227, 0.0
        %v2308 = vmax.f32 %v2228, 0.0
        %v2309 = vmul.f32 %v2286, %v2301
        %v2310 = vmul.f32 %v2288, %v2302
        %v2311 = vmul.f32 %v2290, %v2303
        %v2312 = vmul.f32 %v2292, %v2304
        %v2313 = vmul.f32 %v2294, %v2305
        %v2314 = vmul.f32 %v2296, %v2306
        %v2315 = vmul.f32 %v2298, %v2307
        %v2316 = vmul.f32 %v2300, %v2308
        %2317 = vst [vmem:[%s500] sm:$0xff] %v2309
        %2318 = vst [vmem:[%s500 + $0x8] sm:$0xff] %v2310
        %2319 = vst [vmem:[%s500 + $0x10] sm:$0xff] %v2311
        %2320 = vst [vmem:[%s500 + $0x18] sm:$0xff] %v2312
        %2321 = vst [vmem:[%s500 + $0x20] sm:$0xff] %v2313
        %2322 = vst [vmem:[%s500 + $0x28] sm:$0xff] %v2314
        %2323 = vst [vmem:[%s500 + $0x30] sm:$0xff] %v2315
        %2324 = vst [vmem:[%s500 + $0x38] sm:$0xff] %v2316
        %2325 = vst [vmem:[%s507] sm:$0xff] %v2221
        %2326 = vst [vmem:[%s507 + $0x8] sm:$0xff] %v2222
        %2327 = vst [vmem:[%s507 + $0x10] sm:$0xff] %v2223
        %2328 = vst [vmem:[%s507 + $0x18] sm:$0xff] %v2224
        %2329 = vst [vmem:[%s507 + $0x20] sm:$0xff] %v2225
        %2330 = vst [vmem:[%s507 + $0x28] sm:$0xff] %v2226
        %2331 = vst [vmem:[%s507 + $0x30] sm:$0xff] %v2227
        %2332 = vst [vmem:[%s507 + $0x38] sm:$0xff] %v2228
        %s2333 = sand.u32 %s227, 1
        %s2334 = scalar_lea.sflag [#allocation6], %s2333
        %s2335 = sand.u32 %s227, 1
        %s2336 = smul.addr %s2335, 64
        %s2337 = scalar_lea.vmem [#allocation18], %s2336
        %s2338 = sand.u32 %s253, 1
        %s2339 = scalar_lea.sflag [#allocation20], %s2338
        %s2340 = sand.u32 %s253, 1
        %s2341 = smul.addr %s2340, 64
        %s2342 = scalar_lea.vmem [#allocation19], %s2341
        // Predicated region
        $region85: #{conv_lstm_cell.1} parent=51 // pred_check
          %p2343 = pneg %p237
        $region86: #{conv_lstm_cell.1} parent=51 // pred_check_branch
          %2345 = sbr.rel (%p2343) target = $region88
        $region87: #{conv_lstm_cell.1} parent=51 // pred_region
          %s2347 = ssub.s32 1024, 1024
          %2348 = vsyncadd %s2334, %s2347
          %s2349 = smul.addr %s36, 8
          %s2350 = smul.addr %s2349, 128
          %s2351 = scalar_lea.hbm %s8, %s2350
          %s2352 = sshll.u32 %s2337, 4
          %s2353 = int_to_ptr.vmem [resolvable:$true] %s2352
          %2358 = dma.vmem_to_hbm [thread:$0]  %s2353, 1024, %s2351, %s2334, 256, 256, 16
        $region88: #{conv_lstm_cell.1} parent=51 // pred_fallthru
          _
        // Predicated region
        $region89: #{conv_lstm_cell.1} parent=51 // pred_check
          %p2359 = pneg %p263
        $region90: #{conv_lstm_cell.1} parent=51 // pred_check_branch
          %2361 = sbr.rel (%p2359) target = $region92
        $region91: #{conv_lstm_cell.1} parent=51 // pred_region
          %s2363 = ssub.s32 1024, 1024
          %2364 = vsyncadd %s2339, %s2363
          %s2365 = smul.addr %s36, 8
          %s2366 = smul.addr %s2365, 128
          %s2367 = scalar_lea.hbm %s9, %s2366
          %s2368 = sshll.u32 %s2342, 4
          %s2369 = int_to_ptr.vmem [resolvable:$true] %s2368
          %2374 = dma.vmem_to_hbm [thread:$0]  %s2369, 1024, %s2367, %s2339, 256, 256, 16
        $region92: #{conv_lstm_cell.1} parent=51 // pred_fallthru
          _
      $region52: #{conv_lstm_cell.1} parent=5 // pred_fallthru
        _
      %p2375 = scmp.le.s32.totalorder 2, %s31
      // Predicated region
      $region93: #{conv_lstm_cell.1} parent=5 // pred_check
        %p2376 = pneg %p2375
      $region94: #{conv_lstm_cell.1} parent=5 // pred_check_branch
        %2378 = sbr.rel (%p2376) target = $region96
      $region95: #{conv_lstm_cell.1} parent=5 // pred_region
        %s2379 = ssub.s32 %s31, 2
        // Predicated region
        $region97: #{conv_lstm_cell.1} parent=95 // pred_check
          %p2380 = pneg %p243
        $region98: #{conv_lstm_cell.1} parent=95 // pred_check_branch
          %2382 = sbr.rel (%p2380) target = $region100
        $region99: #{conv_lstm_cell.1} parent=95 // pred_region
          %s2383 = sand.u32 %s228, 1
          %s2384 = scalar_lea.sflag [#allocation6], %s2383
          %s2385 = sand.u32 %s228, 1
          %s2386 = smul.addr %s2385, 64
          %s2387 = scalar_lea.vmem [#allocation18], %s2386
          %2388 = dma.done %s2384, 1024
        $region100: #{conv_lstm_cell.1} parent=95 // pred_fallthru
          _
        // Predicated region
        $region101: #{conv_lstm_cell.1} parent=95 // pred_check
          %p2389 = pneg %p269
        $region102: #{conv_lstm_cell.1} parent=95 // pred_check_branch
          %2391 = sbr.rel (%p2389) target = $region104
        $region103: #{conv_lstm_cell.1} parent=95 // pred_region
          %s2392 = sand.u32 %s254, 1
          %s2393 = scalar_lea.sflag [#allocation20], %s2392
          %s2394 = sand.u32 %s254, 1
          %s2395 = smul.addr %s2394, 64
          %s2396 = scalar_lea.vmem [#allocation19], %s2395
          %2397 = dma.done %s2393, 1024
        $region104: #{conv_lstm_cell.1} parent=95 // pred_fallthru
          _
      $region96: #{conv_lstm_cell.1} parent=5 // pred_fallthru
        _
    $region6: #{conv_lstm_cell.1} parent=1 // loop_footer
      %s35 = sadd.s32 1, %s31
    $region7: #{conv_lstm_cell.1} parent=1 // loop_footer_branch
      %30 = sbr.rel target = $region3
    $region8: #{conv_lstm_cell.1} parent=1 // loop_exit
      _
    %2398 = vsyncpa [#allocation5], 1
    %s2399 = scalar_lea.sflag [#allocation5], 1
    %2400 = vsyncpa %s2399, 1
    %2401 = vsyncpa [#allocation8], 1
    %s2402 = scalar_lea.sflag [#allocation8], 1
    %2403 = vsyncpa %s2402, 1
    %2404 = vsyncpa [#allocation11], 1
    %2405 = vsyncpa [#allocation14], 1
    %2406 = vsyncpa [#allocation17], 1
    %2407 = vsyncpa [#allocation6], 1
    %s2408 = scalar_lea.sflag [#allocation6], 1
    %2409 = vsyncpa %s2408, 1
    %2410 = vsyncpa [#allocation20], 1
    %s2411 = scalar_lea.sflag [#allocation20], 1
    %2412 = vsyncpa %s2411, 1

</llo_original>
